<compile_context>
chip_gen: v7x
topology: tpu7x:2x2x1
jax: 0.10.0
libtpu: 0.0.40
codegen_flags: <defaults>
</compile_context>

<pallas_src>
import functools
import math

import jax
import jax.numpy as jnp
from jax import lax
from jax.experimental import pallas as pl
from jax.experimental.pallas import tpu as pltpu


# ---------------------------------------------------------------------------
# Tile helper: largest tile <= target that divides n and is a multiple of
# `mult` (TPU (8,128) layout rule); otherwise fall back to the full extent.
# ---------------------------------------------------------------------------
def _pick_tile(n, target, mult):
    if n <= target:
        return n
    t = (target // mult) * mult
    while t >= mult:
        if n % t == 0:
            return t
        t -= mult
    return n


# ---------------------------------------------------------------------------
# Tiled linear: y = x @ w with pre-transposed weight w of shape (K, N).
# ---------------------------------------------------------------------------
def _linear_kernel(x_ref, w_ref, o_ref):
    @pl.when(pl.program_id(2) == 0)
    def _():
        o_ref[...] = jnp.zeros_like(o_ref)

    # bf16 operands, f32 accumulation directly into the resident f32 output
    # block (index_map ignores k), so no scratch accumulator / final copy.
    o_ref[...] += jnp.dot(x_ref[...], w_ref[...],
                          preferred_element_type=jnp.float32)


def pallas_linear(x, w, *, tm=512, tn=512, tk=1024):
    """x: (M, K) float; w: (K, N) (torch weight pre-transposed). Returns f32 (M, N)."""
    M, K = x.shape
    K2, N = w.shape
    assert K == K2
    x = x.astype(jnp.bfloat16)          # bf16 DMA + bf16 MXU operands
    w = w.astype(jnp.bfloat16)
    tm = _pick_tile(M, tm, 8)
    tn = _pick_tile(N, tn, 128)
    tk = _pick_tile(K, tk, 128)

    cost = pl.CostEstimate(
        flops=2 * M * N * K,
        transcendentals=0,
        bytes_accessed=2 * (M * K + K * N) + 4 * M * N,
    )
    return pl.pallas_call(
        _linear_kernel,
        out_shape=jax.ShapeDtypeStruct((M, N), jnp.float32),
        grid_spec=pltpu.PrefetchScalarGridSpec(
            num_scalar_prefetch=0,
            grid=(M // tm, N // tn, K // tk),
            in_specs=[
                pl.BlockSpec((tm, tk), lambda i, j, k: (i, k)),
                pl.BlockSpec((tk, tn), lambda i, j, k: (k, j)),
            ],
            out_specs=pl.BlockSpec((tm, tn), lambda i, j, k: (i, j)),
        ),
        compiler_params=pltpu.CompilerParams(
            dimension_semantics=("parallel", "parallel", "arbitrary"),
            vmem_limit_bytes=64 * 1024 * 1024),
        cost_estimate=cost,
    )(x, w)


# ---------------------------------------------------------------------------
# Flash-style attention.  q: (B, S, H*D), k/v: (B, S, Hkv*D) — heads selected
# by static lane slices, GQA folded in (kv head = q head // rep), causal mask
# generated in-kernel, fully-masked kv blocks skipped.
# ---------------------------------------------------------------------------
_MASK_VALUE = -1e30


def _attn_kernel(q_ref, k_ref, v_ref, o_ref, m_sc, l_sc, acc_sc, *,
                 n_head, n_kv_head, head_dim, tq, tkv, causal):
    qi = pl.program_id(1)
    ki = pl.program_id(2)
    rep = n_head // n_kv_head
    D = head_dim

    @pl.when(ki == 0)
    def _():
        m_sc[...] = jnp.full_like(m_sc, -jnp.inf)
        l_sc[...] = jnp.zeros_like(l_sc)
        acc_sc[...] = jnp.zeros_like(acc_sc)

    q_start = qi * tq
    k_start = ki * tkv

    def _compute():
        if causal:
            rows = q_start + lax.broadcasted_iota(jnp.int32, (tq, tkv), 0)
            cols = k_start + lax.broadcasted_iota(jnp.int32, (tq, tkv), 1)
            allow = rows >= cols

        for h in range(n_head):
            g = h // rep                                    # shared KV head
            qh = q_ref[0, :, h * D:(h + 1) * D]             # (tq,  D) bf16
            kh = k_ref[0, :, g * D:(g + 1) * D]             # (tkv, D) bf16
            vh = v_ref[0, :, g * D:(g + 1) * D]             # (tkv, D) bf16

            # scores in f32 (scale already folded into q in the wrapper)
            s = lax.dot_general(
                qh, kh, dimension_numbers=(((1,), (1,)), ((), ())),
                preferred_element_type=jnp.float32)
            if causal:
                s = jnp.where(allow, s, _MASK_VALUE)

            m_prev = m_sc[:, h:h + 1]                       # (tq, 1)
            m_new = jnp.maximum(m_prev, jnp.max(s, axis=-1, keepdims=True))
            alpha = jnp.exp(m_prev - m_new)
            p = jnp.exp(s - m_new)

            l_sc[:, h:h + 1] = alpha * l_sc[:, h:h + 1] + jnp.sum(
                p, axis=-1, keepdims=True)
            acc_sc[h] = alpha * acc_sc[h] + lax.dot_general(
                p.astype(vh.dtype), vh,
                dimension_numbers=(((1,), (0,)), ((), ())),
                preferred_element_type=jnp.float32)
            m_sc[:, h:h + 1] = m_new

    if causal:
        # Skip kv blocks lying entirely above the diagonal.
        @pl.when(k_start <= q_start + tq - 1)
        def _():
            _compute()
    else:
        _compute()

    @pl.when(ki == pl.num_programs(2) - 1)
    def _():
        outs = []
        for h in range(n_head):
            outs.append(acc_sc[h] / l_sc[:, h:h + 1])       # exact normalize
        o_ref[0] = jnp.concatenate(outs, axis=-1).astype(o_ref.dtype)


def pallas_attention(q, k, v, *, n_head, n_kv_head, head_dim, causal=True,
                     tq=512, tkv=256):
    """q: (B, S, H*D); k, v: (B, S, Hkv*D). Returns (B, S, H*D) in q.dtype."""
    B, S, qdim = q.shape
    assert qdim == n_head * head_dim
    tq = _pick_tile(S, tq, 8)
    tkv = _pick_tile(S, tkv, 128)
    out_dtype = q.dtype

    qb = q.astype(jnp.bfloat16)
    kb = k.astype(jnp.bfloat16)
    vb = v.astype(jnp.bfloat16)

    kernel = functools.partial(
        _attn_kernel, n_head=n_head, n_kv_head=n_kv_head, head_dim=head_dim,
        tq=tq, tkv=tkv, causal=causal)

    flops = 4 * B * n_head * S * S * head_dim
    exps = B * n_head * S * S
    if causal:
        flops //= 2
        exps //= 2
    cost = pl.CostEstimate(
        flops=flops, transcendentals=exps,
        bytes_accessed=2 * B * S * (2 * n_head * head_dim
                                    + 2 * n_kv_head * head_dim)
        + 4 * B * S * n_head * head_dim)

    q_spec = pl.BlockSpec((1, tq, n_head * head_dim),
                          lambda b, qi, ki: (b, qi, 0))
    kv_spec = pl.BlockSpec((1, tkv, n_kv_head * head_dim),
                           lambda b, qi, ki: (b, ki, 0))

    return pl.pallas_call(
        kernel,
        out_shape=jax.ShapeDtypeStruct((B, S, n_head * head_dim), out_dtype),
        grid_spec=pltpu.PrefetchScalarGridSpec(
            num_scalar_prefetch=0,
            grid=(B, S // tq, S // tkv),
            in_specs=[q_spec, kv_spec, kv_spec],
            out_specs=q_spec,
            scratch_shapes=[
                pltpu.VMEM((tq, n_head), jnp.float32),            # running max
                pltpu.VMEM((tq, n_head), jnp.float32),            # running denom
                pltpu.VMEM((n_head, tq, head_dim), jnp.float32),  # accumulator
            ],
        ),
        compiler_params=pltpu.CompilerParams(
            dimension_semantics=("parallel", "parallel", "arbitrary"),
            vmem_limit_bytes=64 * 1024 * 1024),
        cost_estimate=cost,
    )(qb, kb, vb)


# ---------------------------------------------------------------------------
# Plain-JAX glue (rotary embedding, reshapes)
# ---------------------------------------------------------------------------
def apply_rotary_emb(x, freqs_cis):
    # x: (B, S, n_heads, head_dim); freqs_cis: (S, head_dim//2, 2)
    xs = x.astype(jnp.float32).reshape(*x.shape[:-1], -1, 2)
    fc = freqs_cis.reshape(1, xs.shape[1], 1, xs.shape[3], 2)
    out_r = xs[..., 0] * fc[..., 0] - xs[..., 1] * fc[..., 1]
    out_i = xs[..., 1] * fc[..., 0] + xs[..., 0] * fc[..., 1]
    out = jnp.stack([out_r, out_i], axis=-1).reshape(x.shape)
    return out.astype(x.dtype)


def attention_forward(x, wqkv_t, wo_t, freqs_cis, *, n_head, n_local_heads,
                      head_dim):
    B, S, dim = x.shape
    kv_size = n_local_heads * head_dim

    # Fused QKV projection (tiled Pallas matmul, bf16 MXU, f32 out).
    qkv = pallas_linear(x.reshape(B * S, dim), wqkv_t)     # (B*S, total_head_dim)
    q = qkv[:, :dim]
    k = qkv[:, dim:dim + kv_size]
    v = qkv[:, dim + kv_size:dim + 2 * kv_size]
    # next_q = qkv[:, dim + 2*kv_size:]  # unused by forward()

    q = q.reshape(B, S, n_head, head_dim)
    k = k.reshape(B, S, n_local_heads, head_dim)

    # Rotary in f32; the 1/sqrt(D) softmax scale is folded into q here so it
    # fuses with the rotary elementwise chain (no extra HBM pass, no per-step
    # score-tile multiply in the kernel).
    scale = 1.0 / math.sqrt(head_dim)
    q = apply_rotary_emb(q, freqs_cis) * scale
    k = apply_rotary_emb(k, freqs_cis)

    # Heads stay packed in the last (lane) dim: no (0,2,1,3) transposes.
    q = q.reshape(B, S, n_head * head_dim)
    k = k.reshape(B, S, kv_size)
    v = v.reshape(B, S, kv_size)

    y = pallas_attention(q, k, v, n_head=n_head, n_kv_head=n_local_heads,
                         head_dim=head_dim, causal=True)   # (B, S, dim)

    y = pallas_linear(y.reshape(B * S, dim), wo_t).reshape(B, S, dim)
    return y


# ---------------------------------------------------------------------------
# Pure-JAX reference (mirrors the PyTorch forward, f32, explicit causal mask)
# ---------------------------------------------------------------------------
def reference_forward(x, wqkv, wo, freqs_cis, mask1, *, n_head, n_local_heads,
                      head_dim):
    B, S, dim = x.shape
    kv_size = n_local_heads * head_dim
    qkv = x.reshape(B * S, dim) @ wqkv.T
    q = qkv[:, :dim].reshape(B, S, n_head, head_dim)
    k = qkv[:, dim:dim + kv_size].reshape(B, S, n_local_heads, head_dim)
    v = qkv[:, dim + kv_size:dim + 2 * kv_size].reshape(B, S, n_local_heads,
                                                        head_dim)
    q = apply_rotary_emb(q, freqs_cis)
    k = apply_rotary_emb(k, freqs_cis)
    q, k, v = (jnp.transpose(a, (0, 2, 1, 3)) for a in (q, k, v))
    rep = n_head // n_local_heads
    k = jnp.repeat(k, rep, axis=1)
    v = jnp.repeat(v, rep, axis=1)
    s = jnp.einsum("bhqd,bhkd->bhqk", q, k) / math.sqrt(head_dim) + mask1
    p = jax.nn.softmax(s.astype(jnp.float32), axis=-1)
    y = jnp.einsum("bhqk,bhkd->bhqd", p, v)
    y = jnp.transpose(y, (0, 2, 1, 3)).reshape(B, S, dim)
    return y @ wo.T


# ---------------------------------------------------------------------------
# Main
# ---------------------------------------------------------------------------
if __name__ == "__main__":
    # Small synthetic config consistent with ModelArgs semantics.
    bsz, seqlen = 2, 8
    dim, n_head, n_local_heads = 32, 4, 2
    head_dim = dim // n_head  # 8
    rope_base = 40000.0
    total_head_dim = (n_head + 2 * n_local_heads + n_head) * head_dim  # 96

    key = jax.random.PRNGKey(0)
    k_x, k_wqkv, k_wo = jax.random.split(key, 3)

    x = jax.random.normal(k_x, (bsz, seqlen, dim), dtype=jnp.float32)
    # torch-style Linear weights: (out_features, in_features), no bias
    wqkv = jax.random.normal(k_wqkv, (total_head_dim, dim), dtype=jnp.float32) * 0.02
    wo = jax.random.normal(k_wo, (dim, dim), dtype=jnp.float32) * 0.02

    # Pre-transpose the static weights once at init (to (K, N)) and cast to
    # bf16 so every kernel DMA already moves bf16 and the MXU RHS needs no
    # per-tile transpose.
    wqkv_t = jnp.asarray(wqkv.T, dtype=jnp.bfloat16)
    wo_t = jnp.asarray(wo.T, dtype=jnp.bfloat16)

    # rotary frequencies: (seqlen, head_dim//2, 2) == (cos, sin)
    inv_freq = 1.0 / (rope_base ** (jnp.arange(0, head_dim, 2, dtype=jnp.float32)
                                    / head_dim))
    t = jnp.arange(seqlen, dtype=jnp.float32)
    freqs = jnp.outer(t, inv_freq)  # (S, head_dim//2)
    freqs_cis = jnp.stack([jnp.cos(freqs), jnp.sin(freqs)], axis=-1)

    fwd = jax.jit(
        functools.partial(
            attention_forward,
            n_head=n_head,
            n_local_heads=n_local_heads,
            head_dim=head_dim,
        )
    )
    y = fwd(x, wqkv_t, wo_t, freqs_cis)
    jax.block_until_ready(y)

    # Reference check (f32 weights / explicit additive causal mask, as in the
    # PyTorch module).  Tolerances cover the bf16 MXU operands.
    causal = jnp.tril(jnp.ones((seqlen, seqlen), dtype=bool))
    mask1 = jnp.where(causal, 0.0, -1e30).astype(jnp.float32)
    y_ref = reference_forward(x, wqkv, wo, freqs_cis, mask1,
                              n_head=n_head, n_local_heads=n_local_heads,
                              head_dim=head_dim)

    assert y.shape == (bsz, seqlen, dim)
    assert bool(jnp.all(jnp.isfinite(y)))
    assert bool(jnp.allclose(y, y_ref, rtol=1e-1, atol=5e-3)), (
        float(jnp.max(jnp.abs(y - y_ref))))
    print("KERNEL_OK")
</pallas_src>

<mosaic_0001>
module attributes {stable_mosaic.version = 11 : i64} {
  func.func @_linear_kernel(%arg0: i32, %arg1: i32, %arg2: i32, %arg3: memref<16x32xbf16, #tpu.memory_space<vmem>>, %arg4: memref<32x96xbf16, #tpu.memory_space<vmem>>, %arg5: memref<16x96xf32, #tpu.memory_space<vmem>>) attributes {dimension_semantics = [#tpu.dimension_semantics<parallel>, #tpu.dimension_semantics<parallel>, #tpu.dimension_semantics<arbitrary>], iteration_bounds = array<i64: 1, 1, 1>, scalar_prefetch = 0 : i64, scratch_operands = 0 : i64, tpu.core_type = #tpu.core_type<tc>, window_params = [{transform_indices = @transform_0, window_bounds = array<i64: 16, 32>}, {transform_indices = @transform_1, window_bounds = array<i64: 32, 96>}, {transform_indices = @transform_2, window_bounds = array<i64: 16, 96>}]} {
    %c0_i32 = arith.constant 0 : i32
    %0 = arith.cmpi eq, %arg2, %c0_i32 : i32
    %1 = arith.extui %0 : i1 to i32
    %c0_i32_0 = arith.constant 0 : i32
    %2 = arith.cmpi ne, %1, %c0_i32_0 : i32
    scf.if %2 {
      %cst_8 = arith.constant 0.000000e+00 : f32
      %9 = vector.broadcast %cst_8 : f32 to vector<16x96xf32>
      %c0_9 = arith.constant 0 : index
      %c0_10 = arith.constant 0 : index
      %10 = vector.load %arg5[%c0_9, %c0_10] : memref<16x96xf32, #tpu.memory_space<vmem>>, vector<16x96xf32>
      tpu.vector_store %arg5[%c0_9, %c0_10], %9 {strides = array<i32>} : memref<16x96xf32, #tpu.memory_space<vmem>>, vector<16x96xf32>,
    } else {
    }
    %c0 = arith.constant 0 : index
    %c0_1 = arith.constant 0 : index
    %3 = vector.load %arg5[%c0, %c0_1] : memref<16x96xf32, #tpu.memory_space<vmem>>, vector<16x96xf32>
    %c0_2 = arith.constant 0 : index
    %c0_3 = arith.constant 0 : index
    %4 = vector.load %arg3[%c0_2, %c0_3] : memref<16x32xbf16, #tpu.memory_space<vmem>>, vector<16x32xbf16>
    %c0_4 = arith.constant 0 : index
    %c0_5 = arith.constant 0 : index
    %5 = vector.load %arg4[%c0_4, %c0_5] : memref<32x96xbf16, #tpu.memory_space<vmem>>, vector<32x96xbf16>
    %cst = arith.constant dense<0.000000e+00> : vector<16x96xf32>
    %6 = tpu.matmul %4, %5, %cst {dimension_numbers = #tpu.dot_dimension_numbers<[1], [0], [0], [1], [0, 0, 1, 1], [], []>} : vector<16x32xbf16>, vector<32x96xbf16>, vector<16x96xf32> -> vector<16x96xf32>
    %7 = arith.addf %3, %6 : vector<16x96xf32>
    %c0_6 = arith.constant 0 : index
    %c0_7 = arith.constant 0 : index
    %8 = vector.load %arg5[%c0_6, %c0_7] : memref<16x96xf32, #tpu.memory_space<vmem>>, vector<16x96xf32>
    tpu.vector_store %arg5[%c0_6, %c0_7], %7 {strides = array<i32>} : memref<16x96xf32, #tpu.memory_space<vmem>>, vector<16x96xf32>,
    return
  }
  func.func @transform_0(%arg0: i32, %arg1: i32, %arg2: i32) -> (i32, i32) {
    %c0_i32 = arith.constant 0 : i32
    return %arg0, %arg2 : i32, i32
  }
  func.func @transform_1(%arg0: i32, %arg1: i32, %arg2: i32) -> (i32, i32) {
    %c0_i32 = arith.constant 0 : i32
    return %arg2, %arg1 : i32, i32
  }
  func.func @transform_2(%arg0: i32, %arg1: i32, %arg2: i32) -> (i32, i32) {
    %c0_i32 = arith.constant 0 : i32
    return %arg0, %arg1 : i32, i32
  }
}

module attributes {stable_mosaic.version = 11 : i64} {
  func.func @_linear_kernel(%arg0: i32, %arg1: i32, %arg2: i32, %arg3: memref<16x32xbf16, #tpu.memory_space<vmem>>, %arg4: memref<32x32xbf16, #tpu.memory_space<vmem>>, %arg5: memref<16x32xf32, #tpu.memory_space<vmem>>) attributes {dimension_semantics = [#tpu.dimension_semantics<parallel>, #tpu.dimension_semantics<parallel>, #tpu.dimension_semantics<arbitrary>], iteration_bounds = array<i64: 1, 1, 1>, scalar_prefetch = 0 : i64, scratch_operands = 0 : i64, tpu.core_type = #tpu.core_type<tc>, window_params = [{transform_indices = @transform_0, window_bounds = array<i64: 16, 32>}, {transform_indices = @transform_1, window_bounds = array<i64: 32, 32>}, {transform_indices = @transform_2, window_bounds = array<i64: 16, 32>}]} {
    %c0_i32 = arith.constant 0 : i32
    %0 = arith.cmpi eq, %arg2, %c0_i32 : i32
    %1 = arith.extui %0 : i1 to i32
    %c0_i32_0 = arith.constant 0 : i32
    %2 = arith.cmpi ne, %1, %c0_i32_0 : i32
    scf.if %2 {
      %cst_8 = arith.constant 0.000000e+00 : f32
      %9 = vector.broadcast %cst_8 : f32 to vector<16x32xf32>
      %c0_9 = arith.constant 0 : index
      %c0_10 = arith.constant 0 : index
      %10 = vector.load %arg5[%c0_9, %c0_10] : memref<16x32xf32, #tpu.memory_space<vmem>>, vector<16x32xf32>
      tpu.vector_store %arg5[%c0_9, %c0_10], %9 {strides = array<i32>} : memref<16x32xf32, #tpu.memory_space<vmem>>, vector<16x32xf32>,
    } else {
    }
    %c0 = arith.constant 0 : index
    %c0_1 = arith.constant 0 : index
    %3 = vector.load %arg5[%c0, %c0_1] : memref<16x32xf32, #tpu.memory_space<vmem>>, vector<16x32xf32>
    %c0_2 = arith.constant 0 : index
    %c0_3 = arith.constant 0 : index
    %4 = vector.load %arg3[%c0_2, %c0_3] : memref<16x32xbf16, #tpu.memory_space<vmem>>, vector<16x32xbf16>
    %c0_4 = arith.constant 0 : index
    %c0_5 = arith.constant 0 : index
    %5 = vector.load %arg4[%c0_4, %c0_5] : memref<32x32xbf16, #tpu.memory_space<vmem>>, vector<32x32xbf16>
    %cst = arith.constant dense<0.000000e+00> : vector<16x32xf32>
    %6 = tpu.matmul %4, %5, %cst {dimension_numbers = #tpu.dot_dimension_numbers<[1], [0], [0], [1], [0, 0, 1, 1], [], []>} : vector<16x32xbf16>, vector<32x32xbf16>, vector<16x32xf32> -> vector<16x32xf32>
    %7 = arith.addf %3, %6 : vector<16x32xf32>
    %c0_6 = arith.constant 0 : index
    %c0_7 = arith.constant 0 : index
    %8 = vector.load %arg5[%c0_6, %c0_7] : memref<16x32xf32, #tpu.memory_space<vmem>>, vector<16x32xf32>
    tpu.vector_store %arg5[%c0_6, %c0_7], %7 {strides = array<i32>} : memref<16x32xf32, #tpu.memory_space<vmem>>, vector<16x32xf32>,
    return
  }
  func.func @transform_0(%arg0: i32, %arg1: i32, %arg2: i32) -> (i32, i32) {
    %c0_i32 = arith.constant 0 : i32
    return %arg0, %arg2 : i32, i32
  }
  func.func @transform_1(%arg0: i32, %arg1: i32, %arg2: i32) -> (i32, i32) {
    %c0_i32 = arith.constant 0 : i32
    return %arg2, %arg1 : i32, i32
  }
  func.func @transform_2(%arg0: i32, %arg1: i32, %arg2: i32) -> (i32, i32) {
    %c0_i32 = arith.constant 0 : i32
    return %arg0, %arg1 : i32, i32
  }
}

module attributes {stable_mosaic.version = 11 : i64} {
  func.func @_attn_kernel(%arg0: i32, %arg1: i32, %arg2: i32, %arg3: memref<1x8x32xbf16, #tpu.memory_space<vmem>>, %arg4: memref<1x8x16xbf16, #tpu.memory_space<vmem>>, %arg5: memref<1x8x16xbf16, #tpu.memory_space<vmem>>, %arg6: memref<1x8x32xf32, #tpu.memory_space<vmem>>, %arg7: memref<8x4xf32, #tpu.memory_space<vmem>>, %arg8: memref<8x4xf32, #tpu.memory_space<vmem>>, %arg9: memref<4x8x8xf32, #tpu.memory_space<vmem>>) attributes {dimension_semantics = [#tpu.dimension_semantics<parallel>, #tpu.dimension_semantics<parallel>, #tpu.dimension_semantics<arbitrary>], iteration_bounds = array<i64: 2, 1, 1>, scalar_prefetch = 0 : i64, scratch_operands = 3 : i64, tpu.core_type = #tpu.core_type<tc>, window_params = [{transform_indices = @transform_0, window_bounds = array<i64: 1, 8, 32>}, {transform_indices = @transform_1, window_bounds = array<i64: 1, 8, 16>}, {transform_indices = @transform_2, window_bounds = array<i64: 1, 8, 16>}, {transform_indices = @transform_3, window_bounds = array<i64: 1, 8, 32>}]} {
    %c0_i32 = arith.constant 0 : i32
    %0 = arith.cmpi eq, %arg2, %c0_i32 : i32
    %1 = arith.extui %0 : i1 to i32
    %c0_i32_0 = arith.constant 0 : i32
    %2 = arith.cmpi ne, %1, %c0_i32_0 : i32
    scf.if %2 {
      %cst = arith.constant 0xFF800000 : f32
      %13 = vector.broadcast %cst : f32 to vector<8x4xf32>
      %c0 = arith.constant 0 : index
      %c0_6 = arith.constant 0 : index
      %14 = vector.load %arg7[%c0, %c0_6] : memref<8x4xf32, #tpu.memory_space<vmem>>, vector<8x4xf32>
      tpu.vector_store %arg7[%c0, %c0_6], %13 {strides = array<i32>} : memref<8x4xf32, #tpu.memory_space<vmem>>, vector<8x4xf32>,
      %cst_7 = arith.constant 0.000000e+00 : f32
      %15 = vector.broadcast %cst_7 : f32 to vector<8x4xf32>
      %c0_8 = arith.constant 0 : index
      %c0_9 = arith.constant 0 : index
      %16 = vector.load %arg8[%c0_8, %c0_9] : memref<8x4xf32, #tpu.memory_space<vmem>>, vector<8x4xf32>
      tpu.vector_store %arg8[%c0_8, %c0_9], %15 {strides = array<i32>} : memref<8x4xf32, #tpu.memory_space<vmem>>, vector<8x4xf32>,
      %cst_10 = arith.constant 0.000000e+00 : f32
      %17 = vector.broadcast %cst_10 : f32 to vector<4x8x8xf32>
      %c0_11 = arith.constant 0 : index
      %c0_12 = arith.constant 0 : index
      %c0_13 = arith.constant 0 : index
      %18 = vector.load %arg9[%c0_11, %c0_12, %c0_13] : memref<4x8x8xf32, #tpu.memory_space<vmem>>, vector<4x8x8xf32>
      tpu.vector_store %arg9[%c0_11, %c0_12, %c0_13], %17 {strides = array<i32>} : memref<4x8x8xf32, #tpu.memory_space<vmem>>, vector<4x8x8xf32>,
    } else {
    }
    %c8_i32 = arith.constant 8 : i32
    %3 = arith.muli %arg1, %c8_i32 : i32
    %c8_i32_1 = arith.constant 8 : i32
    %4 = arith.muli %arg2, %c8_i32_1 : i32
    %c8_i32_2 = arith.constant 8 : i32
    %5 = arith.addi %3, %c8_i32_2 : i32
    %c1_i32 = arith.constant 1 : i32
    %6 = arith.subi %5, %c1_i32 : i32
    %7 = arith.cmpi sle, %4, %6 : i32
    %8 = arith.extui %7 : i1 to i32
    %c0_i32_3 = arith.constant 0 : i32
    %9 = arith.cmpi ne, %8, %c0_i32_3 : i32
    scf.if %9 {
      %13 = tpu.iota {dimensions = array<i32: 0>} : vector<8x8xi32>
      %14 = vector.broadcast %3 : i32 to vector<8x8xi32>
      %15 = arith.addi %14, %13 : vector<8x8xi32>
      %16 = tpu.iota {dimensions = array<i32: 1>} : vector<8x8xi32>
      %17 = vector.broadcast %4 : i32 to vector<8x8xi32>
      %18 = arith.addi %17, %16 : vector<8x8xi32>
      %19 = arith.cmpi sge, %15, %18 : vector<8x8xi32>
      %c0 = arith.constant 0 : index
      %c0_6 = arith.constant 0 : index
      %c0_7 = arith.constant 0 : index
      %20 = vector.load %arg3[%c0, %c0_6, %c0_7] : memref<1x8x32xbf16, #tpu.memory_space<vmem>>, vector<1x8x8xbf16>
      %21 = vector.shape_cast %20 : vector<1x8x8xbf16> to vector<8x8xbf16>
      %c0_8 = arith.constant 0 : index
      %c0_9 = arith.constant 0 : index
      %c0_10 = arith.constant 0 : index
      %22 = vector.load %arg4[%c0_8, %c0_9, %c0_10] : memref<1x8x16xbf16, #tpu.memory_space<vmem>>, vector<1x8x8xbf16>
      %23 = vector.shape_cast %22 : vector<1x8x8xbf16> to vector<8x8xbf16>
      %c0_11 = arith.constant 0 : index
      %c0_12 = arith.constant 0 : index
      %c0_13 = arith.constant 0 : index
      %24 = vector.load %arg5[%c0_11, %c0_12, %c0_13] : memref<1x8x16xbf16, #tpu.memory_space<vmem>>, vector<1x8x8xbf16>
      %25 = vector.shape_cast %24 : vector<1x8x8xbf16> to vector<8x8xbf16>
      %cst = arith.constant dense<0.000000e+00> : vector<8x8xf32>
      %26 = tpu.matmul %21, %23, %cst {dimension_numbers = #tpu.dot_dimension_numbers<[1], [1], [0], [0], [0, 0, 1, 0], [], []>} : vector<8x8xbf16>, vector<8x8xbf16>, vector<8x8xf32> -> vector<8x8xf32>
      %cst_14 = arith.constant -1.000000e+30 : f32
      %27 = vector.broadcast %cst_14 : f32 to vector<8x8xf32>
      %28 = arith.select %19, %26, %27 : vector<8x8xi1>, vector<8x8xf32>
      %c0_15 = arith.constant 0 : index
      %c0_16 = arith.constant 0 : index
      %29 = vector.load %arg7[%c0_15, %c0_16] : memref<8x4xf32, #tpu.memory_space<vmem>>, vector<8x1xf32>
      %cst_17 = arith.constant dense<0xFF800000> : vector<8xf32>
      %30 = vector.multi_reduction <maximumf>, %28, %cst_17 [1] : vector<8x8xf32> to vector<8xf32>
      %31 = vector.shape_cast %30 : vector<8xf32> to vector<8x1xf32>
      %32 = arith.maximumf %29, %31 : vector<8x1xf32>
      %33 = arith.subf %29, %32 : vector<8x1xf32>
      %34 = math.exp %33 : vector<8x1xf32>
      %35 = vector.broadcast %32 : vector<8x1xf32> to vector<8x8xf32>
      %36 = arith.subf %28, %35 : vector<8x8xf32>
      %37 = math.exp %36 : vector<8x8xf32>
      %c0_18 = arith.constant 0 : index
      %c0_19 = arith.constant 0 : index
      %38 = vector.load %arg8[%c0_18, %c0_19] : memref<8x4xf32, #tpu.memory_space<vmem>>, vector<8x1xf32>
      %39 = arith.mulf %34, %38 : vector<8x1xf32>
      %cst_20 = arith.constant dense<0.000000e+00> : vector<8xf32>
      %40 = vector.multi_reduction <add>, %37, %cst_20 [1] : vector<8x8xf32> to vector<8xf32>
      %41 = vector.shape_cast %40 : vector<8xf32> to vector<8x1xf32>
      %42 = arith.addf %39, %41 : vector<8x1xf32>
      %c0_21 = arith.constant 0 : index
      %c0_22 = arith.constant 0 : index
      %43 = vector.load %arg8[%c0_21, %c0_22] : memref<8x4xf32, #tpu.memory_space<vmem>>, vector<8x1xf32>
      tpu.vector_store %arg8[%c0_21, %c0_22], %42 {strides = array<i32>} : memref<8x4xf32, #tpu.memory_space<vmem>>, vector<8x1xf32>,
      %c0_23 = arith.constant 0 : index
      %c0_24 = arith.constant 0 : index
      %c0_25 = arith.constant 0 : index
      %44 = vector.load %arg9[%c0_23, %c0_24, %c0_25] : memref<4x8x8xf32, #tpu.memory_space<vmem>>, vector<1x8x8xf32>
      %45 = vector.shape_cast %44 : vector<1x8x8xf32> to vector<8x8xf32>
      %46 = vector.broadcast %34 : vector<8x1xf32> to vector<8x8xf32>
      %47 = arith.mulf %46, %45 : vector<8x8xf32>
      %48 = arith.truncf %37 : vector<8x8xf32> to vector<8x8xbf16>
      %cst_26 = arith.constant dense<0.000000e+00> : vector<8x8xf32>
      %49 = tpu.matmul %48, %25, %cst_26 {dimension_numbers = #tpu.dot_dimension_numbers<[1], [0], [0], [1], [0, 0, 1, 1], [], []>} : vector<8x8xbf16>, vector<8x8xbf16>, vector<8x8xf32> -> vector<8x8xf32>
      %50 = arith.addf %47, %49 : vector<8x8xf32>
      %c0_27 = arith.constant 0 : index
      %c0_28 = arith.constant 0 : index
      %c0_29 = arith.constant 0 : index
      %51 = vector.load %arg9[%c0_27, %c0_28, %c0_29] : memref<4x8x8xf32, #tpu.memory_space<vmem>>, vector<1x8x8xf32>
      %52 = vector.shape_cast %51 : vector<1x8x8xf32> to vector<8x8xf32>
      %53 = vector.shape_cast %50 : vector<8x8xf32> to vector<1x8x8xf32>
      tpu.vector_store %arg9[%c0_27, %c0_28, %c0_29], %53 {strides = array<i32>} : memref<4x8x8xf32, #tpu.memory_space<vmem>>, vector<1x8x8xf32>,
      %c0_30 = arith.constant 0 : index
      %c0_31 = arith.constant 0 : index
      %54 = vector.load %arg7[%c0_30, %c0_31] : memref<8x4xf32, #tpu.memory_space<vmem>>, vector<8x1xf32>
      tpu.vector_store %arg7[%c0_30, %c0_31], %32 {strides = array<i32>} : memref<8x4xf32, #tpu.memory_space<vmem>>, vector<8x1xf32>,
      %c0_32 = arith.constant 0 : index
      %c0_33 = arith.constant 0 : index
      %c8 = arith.constant 8 : index
      %55 = vector.load %arg3[%c0_32, %c0_33, %c8] : memref<1x8x32xbf16, #tpu.memory_space<vmem>>, vector<1x8x8xbf16>
      %56 = vector.shape_cast %55 : vector<1x8x8xbf16> to vector<8x8xbf16>
      %c0_34 = arith.constant 0 : index
      %c0_35 = arith.constant 0 : index
      %c0_36 = arith.constant 0 : index
      %57 = vector.load %arg4[%c0_34, %c0_35, %c0_36] : memref<1x8x16xbf16, #tpu.memory_space<vmem>>, vector<1x8x8xbf16>
      %58 = vector.shape_cast %57 : vector<1x8x8xbf16> to vector<8x8xbf16>
      %c0_37 = arith.constant 0 : index
      %c0_38 = arith.constant 0 : index
      %c0_39 = arith.constant 0 : index
      %59 = vector.load %arg5[%c0_37, %c0_38, %c0_39] : memref<1x8x16xbf16, #tpu.memory_space<vmem>>, vector<1x8x8xbf16>
      %60 = vector.shape_cast %59 : vector<1x8x8xbf16> to vector<8x8xbf16>
      %cst_40 = arith.constant dense<0.000000e+00> : vector<8x8xf32>
      %61 = tpu.matmul %56, %58, %cst_40 {dimension_numbers = #tpu.dot_dimension_numbers<[1], [1], [0], [0], [0, 0, 1, 0], [], []>} : vector<8x8xbf16>, vector<8x8xbf16>, vector<8x8xf32> -> vector<8x8xf32>
      %cst_41 = arith.constant -1.000000e+30 : f32
      %62 = vector.broadcast %cst_41 : f32 to vector<8x8xf32>
      %63 = arith.select %19, %61, %62 : vector<8x8xi1>, vector<8x8xf32>
      %c0_42 = arith.constant 0 : index
      %c1 = arith.constant 1 : index
      %64 = vector.load %arg7[%c0_42, %c1] : memref<8x4xf32, #tpu.memory_space<vmem>>, vector<8x1xf32>
      %cst_43 = arith.constant dense<0xFF800000> : vector<8xf32>
      %65 = vector.multi_reduction <maximumf>, %63, %cst_43 [1] : vector<8x8xf32> to vector<8xf32>
      %66 = vector.shape_cast %65 : vector<8xf32> to vector<8x1xf32>
      %67 = arith.maximumf %64, %66 : vector<8x1xf32>
      %68 = arith.subf %64, %67 : vector<8x1xf32>
      %69 = math.exp %68 : vector<8x1xf32>
      %70 = vector.broadcast %67 : vector<8x1xf32> to vector<8x8xf32>
      %71 = arith.subf %63, %70 : vector<8x8xf32>
      %72 = math.exp %71 : vector<8x8xf32>
      %c0_44 = arith.constant 0 : index
      %c1_45 = arith.constant 1 : index
      %73 = vector.load %arg8[%c0_44, %c1_45] : memref<8x4xf32, #tpu.memory_space<vmem>>, vector<8x1xf32>
      %74 = arith.mulf %69, %73 : vector<8x1xf32>
      %cst_46 = arith.constant dense<0.000000e+00> : vector<8xf32>
      %75 = vector.multi_reduction <add>, %72, %cst_46 [1] : vector<8x8xf32> to vector<8xf32>
      %76 = vector.shape_cast %75 : vector<8xf32> to vector<8x1xf32>
      %77 = arith.addf %74, %76 : vector<8x1xf32>
      %c0_47 = arith.constant 0 : index
      %c1_48 = arith.constant 1 : index
      %78 = vector.load %arg8[%c0_47, %c1_48] : memref<8x4xf32, #tpu.memory_space<vmem>>, vector<8x1xf32>
      tpu.vector_store %arg8[%c0_47, %c1_48], %77 {strides = array<i32>} : memref<8x4xf32, #tpu.memory_space<vmem>>, vector<8x1xf32>,
      %c1_49 = arith.constant 1 : index
      %c0_50 = arith.constant 0 : index
      %c0_51 = arith.constant 0 : index
      %79 = vector.load %arg9[%c1_49, %c0_50, %c0_51] : memref<4x8x8xf32, #tpu.memory_space<vmem>>, vector<1x8x8xf32>
      %80 = vector.shape_cast %79 : vector<1x8x8xf32> to vector<8x8xf32>
      %81 = vector.broadcast %69 : vector<8x1xf32> to vector<8x8xf32>
      %82 = arith.mulf %81, %80 : vector<8x8xf32>
      %83 = arith.truncf %72 : vector<8x8xf32> to vector<8x8xbf16>
      %cst_52 = arith.constant dense<0.000000e+00> : vector<8x8xf32>
      %84 = tpu.matmul %83, %60, %cst_52 {dimension_numbers = #tpu.dot_dimension_numbers<[1], [0], [0], [1], [0, 0, 1, 1], [], []>} : vector<8x8xbf16>, vector<8x8xbf16>, vector<8x8xf32> -> vector<8x8xf32>
      %85 = arith.addf %82, %84 : vector<8x8xf32>
      %c1_53 = arith.constant 1 : index
      %c0_54 = arith.constant 0 : index
      %c0_55 = arith.constant 0 : index
      %86 = vector.load %arg9[%c1_53, %c0_54, %c0_55] : memref<4x8x8xf32, #tpu.memory_space<vmem>>, vector<1x8x8xf32>
      %87 = vector.shape_cast %86 : vector<1x8x8xf32> to vector<8x8xf32>
      %88 = vector.shape_cast %85 : vector<8x8xf32> to vector<1x8x8xf32>
      tpu.vector_store %arg9[%c1_53, %c0_54, %c0_55], %88 {strides = array<i32>} : memref<4x8x8xf32, #tpu.memory_space<vmem>>, vector<1x8x8xf32>,
      %c0_56 = arith.constant 0 : index
      %c1_57 = arith.constant 1 : index
      %89 = vector.load %arg7[%c0_56, %c1_57] : memref<8x4xf32, #tpu.memory_space<vmem>>, vector<8x1xf32>
      tpu.vector_store %arg7[%c0_56, %c1_57], %67 {strides = array<i32>} : memref<8x4xf32, #tpu.memory_space<vmem>>, vector<8x1xf32>,
      %c0_58 = arith.constant 0 : index
      %c0_59 = arith.constant 0 : index
      %c16 = arith.constant 16 : index
      %90 = vector.load %arg3[%c0_58, %c0_59, %c16] : memref<1x8x32xbf16, #tpu.memory_space<vmem>>, vector<1x8x8xbf16>
      %91 = vector.shape_cast %90 : vector<1x8x8xbf16> to vector<8x8xbf16>
      %c0_60 = arith.constant 0 : index
      %c0_61 = arith.constant 0 : index
      %c8_62 = arith.constant 8 : index
      %92 = vector.load %arg4[%c0_60, %c0_61, %c8_62] : memref<1x8x16xbf16, #tpu.memory_space<vmem>>, vector<1x8x8xbf16>
      %93 = vector.shape_cast %92 : vector<1x8x8xbf16> to vector<8x8xbf16>
      %c0_63 = arith.constant 0 : index
      %c0_64 = arith.constant 0 : index
      %c8_65 = arith.constant 8 : index
      %94 = vector.load %arg5[%c0_63, %c0_64, %c8_65] : memref<1x8x16xbf16, #tpu.memory_space<vmem>>, vector<1x8x8xbf16>
      %95 = vector.shape_cast %94 : vector<1x8x8xbf16> to vector<8x8xbf16>
      %cst_66 = arith.constant dense<0.000000e+00> : vector<8x8xf32>
      %96 = tpu.matmul %91, %93, %cst_66 {dimension_numbers = #tpu.dot_dimension_numbers<[1], [1], [0], [0], [0, 0, 1, 0], [], []>} : vector<8x8xbf16>, vector<8x8xbf16>, vector<8x8xf32> -> vector<8x8xf32>
      %cst_67 = arith.constant -1.000000e+30 : f32
      %97 = vector.broadcast %cst_67 : f32 to vector<8x8xf32>
      %98 = arith.select %19, %96, %97 : vector<8x8xi1>, vector<8x8xf32>
      %c0_68 = arith.constant 0 : index
      %c2 = arith.constant 2 : index
      %99 = vector.load %arg7[%c0_68, %c2] : memref<8x4xf32, #tpu.memory_space<vmem>>, vector<8x1xf32>
      %cst_69 = arith.constant dense<0xFF800000> : vector<8xf32>
      %100 = vector.multi_reduction <maximumf>, %98, %cst_69 [1] : vector<8x8xf32> to vector<8xf32>
      %101 = vector.shape_cast %100 : vector<8xf32> to vector<8x1xf32>
      %102 = arith.maximumf %99, %101 : vector<8x1xf32>
      %103 = arith.subf %99, %102 : vector<8x1xf32>
      %104 = math.exp %103 : vector<8x1xf32>
      %105 = vector.broadcast %102 : vector<8x1xf32> to vector<8x8xf32>
      %106 = arith.subf %98, %105 : vector<8x8xf32>
      %107 = math.exp %106 : vector<8x8xf32>
      %c0_70 = arith.constant 0 : index
      %c2_71 = arith.constant 2 : index
      %108 = vector.load %arg8[%c0_70, %c2_71] : memref<8x4xf32, #tpu.memory_space<vmem>>, vector<8x1xf32>
      %109 = arith.mulf %104, %108 : vector<8x1xf32>
      %cst_72 = arith.constant dense<0.000000e+00> : vector<8xf32>
      %110 = vector.multi_reduction <add>, %107, %cst_72 [1] : vector<8x8xf32> to vector<8xf32>
      %111 = vector.shape_cast %110 : vector<8xf32> to vector<8x1xf32>
      %112 = arith.addf %109, %111 : vector<8x1xf32>
      %c0_73 = arith.constant 0 : index
      %c2_74 = arith.constant 2 : index
      %113 = vector.load %arg8[%c0_73, %c2_74] : memref<8x4xf32, #tpu.memory_space<vmem>>, vector<8x1xf32>
      tpu.vector_store %arg8[%c0_73, %c2_74], %112 {strides = array<i32>} : memref<8x4xf32, #tpu.memory_space<vmem>>, vector<8x1xf32>,
      %c2_75 = arith.constant 2 : index
      %c0_76 = arith.constant 0 : index
      %c0_77 = arith.constant 0 : index
      %114 = vector.load %arg9[%c2_75, %c0_76, %c0_77] : memref<4x8x8xf32, #tpu.memory_space<vmem>>, vector<1x8x8xf32>
      %115 = vector.shape_cast %114 : vector<1x8x8xf32> to vector<8x8xf32>
      %116 = vector.broadcast %104 : vector<8x1xf32> to vector<8x8xf32>
      %117 = arith.mulf %116, %115 : vector<8x8xf32>
      %118 = arith.truncf %107 : vector<8x8xf32> to vector<8x8xbf16>
      %cst_78 = arith.constant dense<0.000000e+00> : vector<8x8xf32>
      %119 = tpu.matmul %118, %95, %cst_78 {dimension_numbers = #tpu.dot_dimension_numbers<[1], [0], [0], [1], [0, 0, 1, 1], [], []>} : vector<8x8xbf16>, vector<8x8xbf16>, vector<8x8xf32> -> vector<8x8xf32>
      %120 = arith.addf %117, %119 : vector<8x8xf32>
      %c2_79 = arith.constant 2 : index
      %c0_80 = arith.constant 0 : index
      %c0_81 = arith.constant 0 : index
      %121 = vector.load %arg9[%c2_79, %c0_80, %c0_81] : memref<4x8x8xf32, #tpu.memory_space<vmem>>, vector<1x8x8xf32>
      %122 = vector.shape_cast %121 : vector<1x8x8xf32> to vector<8x8xf32>
      %123 = vector.shape_cast %120 : vector<8x8xf32> to vector<1x8x8xf32>
      tpu.vector_store %arg9[%c2_79, %c0_80, %c0_81], %123 {strides = array<i32>} : memref<4x8x8xf32, #tpu.memory_space<vmem>>, vector<1x8x8xf32>,
      %c0_82 = arith.constant 0 : index
      %c2_83 = arith.constant 2 : index
      %124 = vector.load %arg7[%c0_82, %c2_83] : memref<8x4xf32, #tpu.memory_space<vmem>>, vector<8x1xf32>
      tpu.vector_store %arg7[%c0_82, %c2_83], %102 {strides = array<i32>} : memref<8x4xf32, #tpu.memory_space<vmem>>, vector<8x1xf32>,
      %c0_84 = arith.constant 0 : index
      %c0_85 = arith.constant 0 : index
      %c24 = arith.constant 24 : index
      %125 = vector.load %arg3[%c0_84, %c0_85, %c24] : memref<1x8x32xbf16, #tpu.memory_space<vmem>>, vector<1x8x8xbf16>
      %126 = vector.shape_cast %125 : vector<1x8x8xbf16> to vector<8x8xbf16>
      %c0_86 = arith.constant 0 : index
      %c0_87 = arith.constant 0 : index
      %c8_88 = arith.constant 8 : index
      %127 = vector.load %arg4[%c0_86, %c0_87, %c8_88] : memref<1x8x16xbf16, #tpu.memory_space<vmem>>, vector<1x8x8xbf16>
      %128 = vector.shape_cast %127 : vector<1x8x8xbf16> to vector<8x8xbf16>
      %c0_89 = arith.constant 0 : index
      %c0_90 = arith.constant 0 : index
      %c8_91 = arith.constant 8 : index
      %129 = vector.load %arg5[%c0_89, %c0_90, %c8_91] : memref<1x8x16xbf16, #tpu.memory_space<vmem>>, vector<1x8x8xbf16>
      %130 = vector.shape_cast %129 : vector<1x8x8xbf16> to vector<8x8xbf16>
      %cst_92 = arith.constant dense<0.000000e+00> : vector<8x8xf32>
      %131 = tpu.matmul %126, %128, %cst_92 {dimension_numbers = #tpu.dot_dimension_numbers<[1], [1], [0], [0], [0, 0, 1, 0], [], []>} : vector<8x8xbf16>, vector<8x8xbf16>, vector<8x8xf32> -> vector<8x8xf32>
      %cst_93 = arith.constant -1.000000e+30 : f32
      %132 = vector.broadcast %cst_93 : f32 to vector<8x8xf32>
      %133 = arith.select %19, %131, %132 : vector<8x8xi1>, vector<8x8xf32>
      %c0_94 = arith.constant 0 : index
      %c3 = arith.constant 3 : index
      %134 = vector.load %arg7[%c0_94, %c3] : memref<8x4xf32, #tpu.memory_space<vmem>>, vector<8x1xf32>
      %cst_95 = arith.constant dense<0xFF800000> : vector<8xf32>
      %135 = vector.multi_reduction <maximumf>, %133, %cst_95 [1] : vector<8x8xf32> to vector<8xf32>
      %136 = vector.shape_cast %135 : vector<8xf32> to vector<8x1xf32>
      %137 = arith.maximumf %134, %136 : vector<8x1xf32>
      %138 = arith.subf %134, %137 : vector<8x1xf32>
      %139 = math.exp %138 : vector<8x1xf32>
      %140 = vector.broadcast %137 : vector<8x1xf32> to vector<8x8xf32>
      %141 = arith.subf %133, %140 : vector<8x8xf32>
      %142 = math.exp %141 : vector<8x8xf32>
      %c0_96 = arith.constant 0 : index
      %c3_97 = arith.constant 3 : index
      %143 = vector.load %arg8[%c0_96, %c3_97] : memref<8x4xf32, #tpu.memory_space<vmem>>, vector<8x1xf32>
      %144 = arith.mulf %139, %143 : vector<8x1xf32>
      %cst_98 = arith.constant dense<0.000000e+00> : vector<8xf32>
      %145 = vector.multi_reduction <add>, %142, %cst_98 [1] : vector<8x8xf32> to vector<8xf32>
      %146 = vector.shape_cast %145 : vector<8xf32> to vector<8x1xf32>
      %147 = arith.addf %144, %146 : vector<8x1xf32>
      %c0_99 = arith.constant 0 : index
      %c3_100 = arith.constant 3 : index
      %148 = vector.load %arg8[%c0_99, %c3_100] : memref<8x4xf32, #tpu.memory_space<vmem>>, vector<8x1xf32>
      tpu.vector_store %arg8[%c0_99, %c3_100], %147 {strides = array<i32>} : memref<8x4xf32, #tpu.memory_space<vmem>>, vector<8x1xf32>,
      %c3_101 = arith.constant 3 : index
      %c0_102 = arith.constant 0 : index
      %c0_103 = arith.constant 0 : index
      %149 = vector.load %arg9[%c3_101, %c0_102, %c0_103] : memref<4x8x8xf32, #tpu.memory_space<vmem>>, vector<1x8x8xf32>
      %150 = vector.shape_cast %149 : vector<1x8x8xf32> to vector<8x8xf32>
      %151 = vector.broadcast %139 : vector<8x1xf32> to vector<8x8xf32>
      %152 = arith.mulf %151, %150 : vector<8x8xf32>
      %153 = arith.truncf %142 : vector<8x8xf32> to vector<8x8xbf16>
      %cst_104 = arith.constant dense<0.000000e+00> : vector<8x8xf32>
      %154 = tpu.matmul %153, %130, %cst_104 {dimension_numbers = #tpu.dot_dimension_numbers<[1], [0], [0], [1], [0, 0, 1, 1], [], []>} : vector<8x8xbf16>, vector<8x8xbf16>, vector<8x8xf32> -> vector<8x8xf32>
      %155 = arith.addf %152, %154 : vector<8x8xf32>
      %c3_105 = arith.constant 3 : index
      %c0_106 = arith.constant 0 : index
      %c0_107 = arith.constant 0 : index
      %156 = vector.load %arg9[%c3_105, %c0_106, %c0_107] : memref<4x8x8xf32, #tpu.memory_space<vmem>>, vector<1x8x8xf32>
      %157 = vector.shape_cast %156 : vector<1x8x8xf32> to vector<8x8xf32>
      %158 = vector.shape_cast %155 : vector<8x8xf32> to vector<1x8x8xf32>
      tpu.vector_store %arg9[%c3_105, %c0_106, %c0_107], %158 {strides = array<i32>} : memref<4x8x8xf32, #tpu.memory_space<vmem>>, vector<1x8x8xf32>,
      %c0_108 = arith.constant 0 : index
      %c3_109 = arith.constant 3 : index
      %159 = vector.load %arg7[%c0_108, %c3_109] : memref<8x4xf32, #tpu.memory_space<vmem>>, vector<8x1xf32>
      tpu.vector_store %arg7[%c0_108, %c3_109], %137 {strides = array<i32>} : memref<8x4xf32, #tpu.memory_space<vmem>>, vector<8x1xf32>,
    } else {
    }
    %c0_i32_4 = arith.constant 0 : i32
    %10 = arith.cmpi eq, %arg2, %c0_i32_4 : i32
    %11 = arith.extui %10 : i1 to i32
    %c0_i32_5 = arith.constant 0 : i32
    %12 = arith.cmpi ne, %11, %c0_i32_5 : i32
    scf.if %12 {
      %c0 = arith.constant 0 : index
      %c0_6 = arith.constant 0 : index
      %c0_7 = arith.constant 0 : index
      %13 = vector.load %arg9[%c0, %c0_6, %c0_7] : memref<4x8x8xf32, #tpu.memory_space<vmem>>, vector<1x8x8xf32>
      %14 = vector.shape_cast %13 : vector<1x8x8xf32> to vector<8x8xf32>
      %c0_8 = arith.constant 0 : index
      %c0_9 = arith.constant 0 : index
      %15 = vector.load %arg8[%c0_8, %c0_9] : memref<8x4xf32, #tpu.memory_space<vmem>>, vector<8x1xf32>
      %16 = vector.broadcast %15 : vector<8x1xf32> to vector<8x8xf32>
      %17 = arith.divf %14, %16 : vector<8x8xf32>
      %c1 = arith.constant 1 : index
      %c0_10 = arith.constant 0 : index
      %c0_11 = arith.constant 0 : index
      %18 = vector.load %arg9[%c1, %c0_10, %c0_11] : memref<4x8x8xf32, #tpu.memory_space<vmem>>, vector<1x8x8xf32>
      %19 = vector.shape_cast %18 : vector<1x8x8xf32> to vector<8x8xf32>
      %c0_12 = arith.constant 0 : index
      %c1_13 = arith.constant 1 : index
      %20 = vector.load %arg8[%c0_12, %c1_13] : memref<8x4xf32, #tpu.memory_space<vmem>>, vector<8x1xf32>
      %21 = vector.broadcast %20 : vector<8x1xf32> to vector<8x8xf32>
      %22 = arith.divf %19, %21 : vector<8x8xf32>
      %c2 = arith.constant 2 : index
      %c0_14 = arith.constant 0 : index
      %c0_15 = arith.constant 0 : index
      %23 = vector.load %arg9[%c2, %c0_14, %c0_15] : memref<4x8x8xf32, #tpu.memory_space<vmem>>, vector<1x8x8xf32>
      %24 = vector.shape_cast %23 : vector<1x8x8xf32> to vector<8x8xf32>
      %c0_16 = arith.constant 0 : index
      %c2_17 = arith.constant 2 : index
      %25 = vector.load %arg8[%c0_16, %c2_17] : memref<8x4xf32, #tpu.memory_space<vmem>>, vector<8x1xf32>
      %26 = vector.broadcast %25 : vector<8x1xf32> to vector<8x8xf32>
      %27 = arith.divf %24, %26 : vector<8x8xf32>
      %c3 = arith.constant 3 : index
      %c0_18 = arith.constant 0 : index
      %c0_19 = arith.constant 0 : index
      %28 = vector.load %arg9[%c3, %c0_18, %c0_19] : memref<4x8x8xf32, #tpu.memory_space<vmem>>, vector<1x8x8xf32>
      %29 = vector.shape_cast %28 : vector<1x8x8xf32> to vector<8x8xf32>
      %c0_20 = arith.constant 0 : index
      %c3_21 = arith.constant 3 : index
      %30 = vector.load %arg8[%c0_20, %c3_21] : memref<8x4xf32, #tpu.memory_space<vmem>>, vector<8x1xf32>
      %31 = vector.broadcast %30 : vector<8x1xf32> to vector<8x8xf32>
      %32 = arith.divf %29, %31 : vector<8x8xf32>
      %33 = tpu.concatenate %17, %22, %27, %32 in 1 : vector<8x8xf32>, vector<8x8xf32>, vector<8x8xf32>, vector<8x8xf32> -> vector<8x32xf32>
      %c0_22 = arith.constant 0 : index
      %c0_23 = arith.constant 0 : index
      %c0_24 = arith.constant 0 : index
      %34 = vector.load %arg6[%c0_22, %c0_23, %c0_24] : memref<1x8x32xf32, #tpu.memory_space<vmem>>, vector<1x8x32xf32>
      %35 = vector.shape_cast %34 : vector<1x8x32xf32> to vector<8x32xf32>
      %36 = vector.shape_cast %33 : vector<8x32xf32> to vector<1x8x32xf32>
      tpu.vector_store %arg6[%c0_22, %c0_23, %c0_24], %36 {strides = array<i32>} : memref<1x8x32xf32, #tpu.memory_space<vmem>>, vector<1x8x32xf32>,
    } else {
    }
    return
  }
  func.func @transform_0(%arg0: i32, %arg1: i32, %arg2: i32) -> (i32, i32, i32) {
    %c0_i32 = arith.constant 0 : i32
    %c0_i32_0 = arith.constant 0 : i32
    return %arg0, %arg1, %c0_i32 : i32, i32, i32
  }
  func.func @transform_1(%arg0: i32, %arg1: i32, %arg2: i32) -> (i32, i32, i32) {
    %c0_i32 = arith.constant 0 : i32
    %c0_i32_0 = arith.constant 0 : i32
    return %arg0, %arg2, %c0_i32 : i32, i32, i32
  }
  func.func @transform_2(%arg0: i32, %arg1: i32, %arg2: i32) -> (i32, i32, i32) {
    %c0_i32 = arith.constant 0 : i32
    %c0_i32_0 = arith.constant 0 : i32
    return %arg0, %arg2, %c0_i32 : i32, i32, i32
  }
  func.func @transform_3(%arg0: i32, %arg1: i32, %arg2: i32) -> (i32, i32, i32) {
    %c0_i32 = arith.constant 0 : i32
    %c0_i32_0 = arith.constant 0 : i32
    return %arg0, %arg1, %c0_i32 : i32, i32, i32
  }
}

</mosaic_0001>

<llo_original>
// kernel: attention_forward.3
$region0: #{attention_forward.3}
  #allocation0 [shape = 'u32[]', space=smem, size = 0x4, offset = 0x4, fixed_abs, tag = 'smem constant byte address 0x4 - core index']
  #allocation1 [shape = 'u32[144,128]{1,0:T(1,128)}', space=vmem, size = 0x12000, scoped, tag = 'internal scratch']
  %s0 = inlined_call_operand.hbm [shape: bf16[16,32], index: 0, kind: input, shape index: {}]
  %s1 = inlined_call_operand.hbm [shape: bf16[32,96], index: 1, kind: input, shape index: {}]
  %s2 = inlined_call_operand.hbm [shape: f32[16,96], index: 2, kind: output, shape index: {}]
  %s3 = sld [smem:[#allocation0]]
  $region30: #{attention_forward.3} parent=0
    _
  %s5 = ssub.s32 1, %s3
  %s6 = scalar_select 0, %s5, %s3
  $region1: #{attention_forward.3} parent=0
    #allocation2 [shape = 'u8[4096]{0}', space=vmem, size = 0x1000, scoped, tag = 'input window, operand 0, single buffered']
    #allocation3 [shape = 's32[1]{0}', space=sflag, size = 0x4, scoped, tag = 'scoped memory for attention_forward.3']
    #allocation4 [shape = 's32[1]{0}', space=sflag, size = 0x4, scoped, tag = 'scoped memory for attention_forward.3']
    #allocation5 [shape = 'u8[8192]{0}', space=vmem, size = 0x2000, scoped, tag = 'input window, operand 1, single buffered']
    #allocation6 [shape = 's32[1]{0}', space=sflag, size = 0x4, scoped, tag = 'scoped memory for attention_forward.3']
    #allocation7 [shape = 'u8[8192]{0}', space=vmem, size = 0x2000, scoped, tag = 'output window, operand 0, single buffered']
    %7 = vsyncpa [#allocation3], 0
    %8 = vsyncpa [#allocation6], 0
    %9 = vsyncpa [#allocation4], 0
    // Predicated region
    $region2: #{attention_forward.3} parent=1 // pred_check
      _
    $region3: #{attention_forward.3} parent=1 // pred_check_branch
      %11 = sbr.rel (0) target = $region5
    $region4: #{attention_forward.3} parent=1 // pred_region
      %s13 = ssub.s32 128, 128
      %14 = vsyncadd [#allocation3], %s13
      %s15 = sshll.u32 [#allocation2], 4
      %s16 = int_to_ptr.vmem [resolvable:$true] %s15
      %21 = dma.hbm_to_vmem [thread:$0]  %s0, 128, %s16, [#allocation3], 64, 64, 4
    $region5: #{attention_forward.3} parent=1 // pred_fallthru
      _
    // Predicated region
    $region6: #{attention_forward.3} parent=1 // pred_check
      _
    $region7: #{attention_forward.3} parent=1 // pred_check_branch
      %23 = sbr.rel (0) target = $region9
    $region8: #{attention_forward.3} parent=1 // pred_region
      %s25 = ssub.s32 256, 256
      %26 = vsyncadd [#allocation6], %s25
      %s27 = sshll.u32 [#allocation5], 4
      %s28 = int_to_ptr.vmem [resolvable:$true] %s27
      %33 = dma.hbm_to_vmem [thread:$0]  %s1, 256, %s28, [#allocation6], 64, 64, 4
    $region9: #{attention_forward.3} parent=1 // pred_fallthru
      _
    // Predicated region
    $region10: #{attention_forward.3} parent=1 // pred_check
      _
    $region11: #{attention_forward.3} parent=1 // pred_check_branch
      %35 = sbr.rel (0) target = $region13
    $region12: #{attention_forward.3} parent=1 // pred_region
      %36 = dma.done [#allocation3], 128
    $region13: #{attention_forward.3} parent=1 // pred_fallthru
      _
    // Predicated region
    $region14: #{attention_forward.3} parent=1 // pred_check
      _
    $region15: #{attention_forward.3} parent=1 // pred_check_branch
      %38 = sbr.rel (0) target = $region17
    $region16: #{attention_forward.3} parent=1 // pred_region
      %39 = dma.done [#allocation6], 256
    $region17: #{attention_forward.3} parent=1 // pred_fallthru
      _
    %p41 = scmp.eq.s32.totalorder 0, 0
    // Predicated region
    $region18: #{attention_forward.3} parent=1 // pred_check
      %p42 = pneg %p41
    $region19: #{attention_forward.3} parent=1 // pred_check_branch
      %44 = sbr.rel (%p42) target = $region21
    $region20: #{attention_forward.3} parent=1 // pred_region
      %vm45 = vcmask 785408
      %46 = vst.msk [vmem:[#allocation7] sm:$0xff] %vm45, 0.0
      %47 = vst.msk [vmem:[#allocation7 + $0x8] sm:$0xff] %vm45, 0.0
    $region21: #{attention_forward.3} parent=1 // pred_fallthru
      _
    %v48 = vld [vmem:[#allocation7] sm:$0xff]
    %v49 = vld [vmem:[#allocation7 + $0x8] sm:$0xff]
    %v50 = vld [vmem:[#allocation2] sm:$0xf]
    %v51 = vld [vmem:[#allocation2 + $0x4] sm:$0xf]
    %v52 = vld [vmem:[#allocation5] sm:$0xf]
    %v53 = vld [vmem:[#allocation5 + $0x4] sm:$0xf]
    %v54 = vld [vmem:[#allocation5 + $0x8] sm:$0xf]
    %v55 = vld [vmem:[#allocation5 + $0xc] sm:$0xf]
    %v58 = vunpack.c.l.b16 %v50
    %v59 = vunpack.c.l.b16 %v51
    %v60 = vpack.c.b16 %v59, %v58
    %v65 = vunpack.c.l.b16 %v52
    %v66 = vunpack.c.l.b16 %v53
    %v67 = vunpack.c.l.b16 %v54
    %v68 = vunpack.c.l.b16 %v55
    %v69 = vpack.c.b16 %v66, %v65
    %v70 = vpack.c.b16 %v68, %v67
    %vm73 = vcmask 261120
    %v75 = vsel %vm73, %v60, 0
    %77 = vmatprep.subr.bf16.mxu0 0
    %78 = vmatpush1.bf16.msra.mxu0 %v69
    %79 = vmatprep.subr.bf16.mxu0 0
    %80 = vmatpush1.bf16.msra.mxu0 %v70
    %81 = vmatprep.subr.bf16.mxu0 0
    %82 = vmatpush1.bf16.msra.mxu0 0
    %83 = vmatprep.subr.bf16.mxu0 0
    %84 = vmatpush1.bf16.msra.mxu0 0
    %85 = vmatprep.subr.bf16.mxu0 0
    %86 = vmatpush1.bf16.msra.mxu0 0
    %87 = vmatprep.subr.bf16.mxu0 0
    %88 = vmatpush1.bf16.msra.mxu0 0
    %89 = vmatprep.subr.bf16.mxu0 0
    %90 = vmatpush1.bf16.msra.mxu0 0
    %91 = vmatprep.subr.bf16.mxu0 0
    %92 = vmatpush1.bf16.msra.mxu0 0
    %93 = vmatprep.subr.bf16.mxu0 0
    %94 = vmatpush1.bf16.msra.mxu0 0
    %95 = vmatprep.subr.bf16.mxu0 0
    %96 = vmatpush1.bf16.msra.mxu0 0
    %97 = vmatprep.subr.bf16.mxu0 0
    %98 = vmatpush1.bf16.msra.mxu0 0
    %99 = vmatprep.subr.bf16.mxu0 0
    %100 = vmatpush1.bf16.msra.mxu0 0
    %101 = vmatprep.subr.bf16.mxu0 0
    %102 = vmatpush1.bf16.msra.mxu0 0
    %103 = vmatprep.subr.bf16.mxu0 0
    %104 = vmatpush1.bf16.msra.mxu0 0
    %105 = vmatprep.subr.bf16.mxu0 0
    %106 = vmatpush1.bf16.msra.mxu0 0
    %107 = vmatprep.subr.bf16.mxu0 0
    %108 = vmatpush1.bf16.msra.mxu0 0
    %109 = vmatprep.mubr.bf16.mxu0 0
    %110 = vmatmul.mubr.bf16.gmra.mrb[0].mxu0 %v75
    %v111 = vpop.f32.mrb[0].mxu0
    %v112 = vadd.f32 0.0, %v111
    %v113 = vpop.f32.mrb[0].mxu0
    %v114 = vpop.f32.mrb[0].mxu0
    %v115 = vadd.f32 0.0, %v114
    %v116 = vpop.f32.mrb[0].mxu0
    %117 = vdwg.mxu0
    %v118 = vadd.f32 %v48, %v112
    %v119 = vadd.f32 %v49, %v115
    %vm120 = vcmask 785408
    %121 = vst.msk [vmem:[#allocation7] sm:$0xff] %vm120, %v118
    %122 = vst.msk [vmem:[#allocation7 + $0x8] sm:$0xff] %vm120, %v119
    // Predicated region
    $region22: #{attention_forward.3} parent=1 // pred_check
      _
    $region23: #{attention_forward.3} parent=1 // pred_check_branch
      %124 = sbr.rel (0) target = $region25
    $region24: #{attention_forward.3} parent=1 // pred_region
      %s126 = ssub.s32 256, 256
      %127 = vsyncadd [#allocation4], %s126
      %s128 = sshll.u32 [#allocation7], 4
      %s129 = int_to_ptr.vmem [resolvable:$true] %s128
      %134 = dma.vmem_to_hbm [thread:$0]  %s129, 256, %s2, [#allocation4], 128, 128, 8
    $region25: #{attention_forward.3} parent=1 // pred_fallthru
      _
    // Predicated region
    $region26: #{attention_forward.3} parent=1 // pred_check
      _
    $region27: #{attention_forward.3} parent=1 // pred_check_branch
      %136 = sbr.rel (0) target = $region29
    $region28: #{attention_forward.3} parent=1 // pred_region
      %137 = dma.done [#allocation4], 256
    $region29: #{attention_forward.3} parent=1 // pred_fallthru
      _
    %138 = vsyncpa [#allocation3], 1
    %139 = vsyncpa [#allocation6], 1
    %140 = vsyncpa [#allocation4], 1

// kernel: attention_forward.5
$region0: #{attention_forward.5}
  #allocation0 [shape = 'u32[]', space=smem, size = 0x4, offset = 0x4, fixed_abs, tag = 'smem constant byte address 0x4 - core index']
  #allocation1 [shape = 'u32[144,128]{1,0:T(1,128)}', space=vmem, size = 0x12000, scoped, tag = 'internal scratch']
  %s0 = inlined_call_operand.hbm [shape: bf16[16,32], index: 0, kind: input, shape index: {}]
  %s1 = inlined_call_operand.hbm [shape: bf16[32,32], index: 1, kind: input, shape index: {}]
  %s2 = inlined_call_operand.hbm [shape: f32[16,32], index: 2, kind: output, shape index: {}]
  %s3 = sld [smem:[#allocation0]]
  $region30: #{attention_forward.5} parent=0
    _
  %s5 = ssub.s32 1, %s3
  %s6 = scalar_select 0, %s5, %s3
  $region1: #{attention_forward.5} parent=0
    #allocation2 [shape = 'u8[4096]{0}', space=vmem, size = 0x1000, scoped, tag = 'input window, operand 0, single buffered']
    #allocation3 [shape = 's32[1]{0}', space=sflag, size = 0x4, scoped, tag = 'scoped memory for attention_forward.5']
    #allocation4 [shape = 's32[1]{0}', space=sflag, size = 0x4, scoped, tag = 'scoped memory for attention_forward.5']
    #allocation5 [shape = 'u8[8192]{0}', space=vmem, size = 0x2000, scoped, tag = 'input window, operand 1, single buffered']
    #allocation6 [shape = 's32[1]{0}', space=sflag, size = 0x4, scoped, tag = 'scoped memory for attention_forward.5']
    #allocation7 [shape = 'u8[8192]{0}', space=vmem, size = 0x2000, scoped, tag = 'output window, operand 0, single buffered']
    %7 = vsyncpa [#allocation3], 0
    %8 = vsyncpa [#allocation6], 0
    %9 = vsyncpa [#allocation4], 0
    // Predicated region
    $region2: #{attention_forward.5} parent=1 // pred_check
      _
    $region3: #{attention_forward.5} parent=1 // pred_check_branch
      %11 = sbr.rel (0) target = $region5
    $region4: #{attention_forward.5} parent=1 // pred_region
      %s13 = ssub.s32 128, 128
      %14 = vsyncadd [#allocation3], %s13
      %s15 = sshll.u32 [#allocation2], 4
      %s16 = int_to_ptr.vmem [resolvable:$true] %s15
      %21 = dma.hbm_to_vmem [thread:$0]  %s0, 128, %s16, [#allocation3], 64, 64, 4
    $region5: #{attention_forward.5} parent=1 // pred_fallthru
      _
    // Predicated region
    $region6: #{attention_forward.5} parent=1 // pred_check
      _
    $region7: #{attention_forward.5} parent=1 // pred_check_branch
      %23 = sbr.rel (0) target = $region9
    $region8: #{attention_forward.5} parent=1 // pred_region
      %s25 = ssub.s32 256, 256
      %26 = vsyncadd [#allocation6], %s25
      %s27 = sshll.u32 [#allocation5], 4
      %s28 = int_to_ptr.vmem [resolvable:$true] %s27
      %33 = dma.hbm_to_vmem [thread:$0]  %s1, 256, %s28, [#allocation6], 64, 64, 4
    $region9: #{attention_forward.5} parent=1 // pred_fallthru
      _
    // Predicated region
    $region10: #{attention_forward.5} parent=1 // pred_check
      _
    $region11: #{attention_forward.5} parent=1 // pred_check_branch
      %35 = sbr.rel (0) target = $region13
    $region12: #{attention_forward.5} parent=1 // pred_region
      %36 = dma.done [#allocation3], 128
    $region13: #{attention_forward.5} parent=1 // pred_fallthru
      _
    // Predicated region
    $region14: #{attention_forward.5} parent=1 // pred_check
      _
    $region15: #{attention_forward.5} parent=1 // pred_check_branch
      %38 = sbr.rel (0) target = $region17
    $region16: #{attention_forward.5} parent=1 // pred_region
      %39 = dma.done [#allocation6], 256
    $region17: #{attention_forward.5} parent=1 // pred_fallthru
      _
    %p41 = scmp.eq.s32.totalorder 0, 0
    // Predicated region
    $region18: #{attention_forward.5} parent=1 // pred_check
      %p42 = pneg %p41
    $region19: #{attention_forward.5} parent=1 // pred_check_branch
      %44 = sbr.rel (%p42) target = $region21
    $region20: #{attention_forward.5} parent=1 // pred_region
      %vm45 = vcmask 261120
      %46 = vst.msk [vmem:[#allocation7] sm:$0xff] %vm45, 0.0
      %47 = vst.msk [vmem:[#allocation7 + $0x8] sm:$0xff] %vm45, 0.0
    $region21: #{attention_forward.5} parent=1 // pred_fallthru
      _
    %v48 = vld [vmem:[#allocation7] sm:$0xff]
    %v49 = vld [vmem:[#allocation7 + $0x8] sm:$0xff]
    %v50 = vld [vmem:[#allocation2] sm:$0xf]
    %v51 = vld [vmem:[#allocation2 + $0x4] sm:$0xf]
    %v52 = vld [vmem:[#allocation5] sm:$0xf]
    %v53 = vld [vmem:[#allocation5 + $0x4] sm:$0xf]
    %v54 = vld [vmem:[#allocation5 + $0x8] sm:$0xf]
    %v55 = vld [vmem:[#allocation5 + $0xc] sm:$0xf]
    %v58 = vunpack.c.l.b16 %v50
    %v59 = vunpack.c.l.b16 %v51
    %v60 = vpack.c.b16 %v59, %v58
    %v65 = vunpack.c.l.b16 %v52
    %v66 = vunpack.c.l.b16 %v53
    %v67 = vunpack.c.l.b16 %v54
    %v68 = vunpack.c.l.b16 %v55
    %v69 = vpack.c.b16 %v66, %v65
    %v70 = vpack.c.b16 %v68, %v67
    %vm73 = vcmask 261120
    %v75 = vsel %vm73, %v60, 0
    %77 = vmatprep.subr.bf16.mxu0 0
    %78 = vmatpush1.bf16.msra.mxu0 %v69
    %79 = vmatprep.subr.bf16.mxu0 0
    %80 = vmatpush1.bf16.msra.mxu0 %v70
    %81 = vmatprep.subr.bf16.mxu0 0
    %82 = vmatpush1.bf16.msra.mxu0 0
    %83 = vmatprep.subr.bf16.mxu0 0
    %84 = vmatpush1.bf16.msra.mxu0 0
    %85 = vmatprep.subr.bf16.mxu0 0
    %86 = vmatpush1.bf16.msra.mxu0 0
    %87 = vmatprep.subr.bf16.mxu0 0
    %88 = vmatpush1.bf16.msra.mxu0 0
    %89 = vmatprep.subr.bf16.mxu0 0
    %90 = vmatpush1.bf16.msra.mxu0 0
    %91 = vmatprep.subr.bf16.mxu0 0
    %92 = vmatpush1.bf16.msra.mxu0 0
    %93 = vmatprep.subr.bf16.mxu0 0
    %94 = vmatpush1.bf16.msra.mxu0 0
    %95 = vmatprep.subr.bf16.mxu0 0
    %96 = vmatpush1.bf16.msra.mxu0 0
    %97 = vmatprep.subr.bf16.mxu0 0
    %98 = vmatpush1.bf16.msra.mxu0 0
    %99 = vmatprep.subr.bf16.mxu0 0
    %100 = vmatpush1.bf16.msra.mxu0 0
    %101 = vmatprep.subr.bf16.mxu0 0
    %102 = vmatpush1.bf16.msra.mxu0 0
    %103 = vmatprep.subr.bf16.mxu0 0
    %104 = vmatpush1.bf16.msra.mxu0 0
    %105 = vmatprep.subr.bf16.mxu0 0
    %106 = vmatpush1.bf16.msra.mxu0 0
    %107 = vmatprep.subr.bf16.mxu0 0
    %108 = vmatpush1.bf16.msra.mxu0 0
    %109 = vmatprep.mubr.bf16.mxu0 0
    %110 = vmatmul.mubr.bf16.gmra.mrb[0].mxu0 %v75
    %v111 = vpop.f32.mrb[0].mxu0
    %v112 = vadd.f32 0.0, %v111
    %v113 = vpop.f32.mrb[0].mxu0
    %v114 = vpop.f32.mrb[0].mxu0
    %v115 = vadd.f32 0.0, %v114
    %v116 = vpop.f32.mrb[0].mxu0
    %117 = vdwg.mxu0
    %v118 = vadd.f32 %v48, %v112
    %v119 = vadd.f32 %v49, %v115
    %120 = vst.msk [vmem:[#allocation7] sm:$0xff] %vm73, %v118
    %121 = vst.msk [vmem:[#allocation7 + $0x8] sm:$0xff] %vm73, %v119
    // Predicated region
    $region22: #{attention_forward.5} parent=1 // pred_check
      _
    $region23: #{attention_forward.5} parent=1 // pred_check_branch
      %123 = sbr.rel (0) target = $region25
    $region24: #{attention_forward.5} parent=1 // pred_region
      %s125 = ssub.s32 256, 256
      %126 = vsyncadd [#allocation4], %s125
      %s127 = sshll.u32 [#allocation7], 4
      %s128 = int_to_ptr.vmem [resolvable:$true] %s127
      %133 = dma.vmem_to_hbm [thread:$0]  %s128, 256, %s2, [#allocation4], 128, 128, 8
    $region25: #{attention_forward.5} parent=1 // pred_fallthru
      _
    // Predicated region
    $region26: #{attention_forward.5} parent=1 // pred_check
      _
    $region27: #{attention_forward.5} parent=1 // pred_check_branch
      %135 = sbr.rel (0) target = $region29
    $region28: #{attention_forward.5} parent=1 // pred_region
      %136 = dma.done [#allocation4], 256
    $region29: #{attention_forward.5} parent=1 // pred_fallthru
      _
    %137 = vsyncpa [#allocation3], 1
    %138 = vsyncpa [#allocation6], 1
    %139 = vsyncpa [#allocation4], 1

// kernel: attention_forward.4
$region0: #{attention_forward.4}
  #allocation0 [shape = 'u32[]', space=smem, size = 0x4, offset = 0x4, fixed_abs, tag = 'smem constant byte address 0x4 - core index']
  #allocation1 [shape = 'u32[144,128]{1,0:T(1,128)}', space=vmem, size = 0x12000, scoped, tag = 'internal scratch']
  #allocation2 [shape = 'f32[8,4]{1,0:T(8,128)}', space=vmem, size = 0x1000, scoped, tag = 'scratch operand']
  #allocation3 [shape = 'f32[8,4]{1,0:T(8,128)}', space=vmem, size = 0x1000, scoped, tag = 'scratch operand']
  #allocation4 [shape = 'f32[4,8,8]{2,1,0:T(8,128)}', space=vmem, size = 0x4000, scoped, tag = 'scratch operand']
  %s0 = inlined_call_operand.hbm [shape: bf16[2,8,32], index: 0, kind: input, shape index: {}]
  %s1 = inlined_call_operand.hbm [shape: bf16[2,8,16], index: 1, kind: input, shape index: {}]
  %s2 = inlined_call_operand.hbm [shape: bf16[2,8,16], index: 2, kind: input, shape index: {}]
  %s3 = inlined_call_operand.hbm [shape: f32[2,8,32], index: 3, kind: output, shape index: {}]
  %s4 = sld [smem:[#allocation0]]
  $region69: #{attention_forward.4} parent=0
    _
  %s6 = ssub.s32 1, %s4
  %s7 = scalar_select 0, %s6, %s4
  $region1: #{attention_forward.4} parent=0
    #allocation5 [shape = 'u8[4096]{0}', space=vmem, size = 0x1000, scoped, tag = 'input window, operand 0']
    #allocation6 [shape = 's32[2]{0}', space=sflag, size = 0x8, scoped, tag = 'scoped memory for attention_forward.4']
    #allocation7 [shape = 's32[2]{0}', space=sflag, size = 0x8, scoped, tag = 'scoped memory for attention_forward.4']
    #allocation8 [shape = 'u8[4096]{0}', space=vmem, size = 0x1000, scoped, tag = 'input window, operand 1']
    #allocation9 [shape = 's32[2]{0}', space=sflag, size = 0x8, scoped, tag = 'scoped memory for attention_forward.4']
    #allocation10 [shape = 'u8[4096]{0}', space=vmem, size = 0x1000, scoped, tag = 'input window, operand 2']
    #allocation11 [shape = 'u8[8192]{0}', space=vmem, size = 0x2000, scoped, tag = 'output window, operand 0']
    %8 = vsyncpa [#allocation6], 0
    %s9 = scalar_lea.sflag [#allocation6], 1
    %10 = vsyncpa %s9, 0
    %11 = vsyncpa [#allocation9], 0
    %s12 = scalar_lea.sflag [#allocation9], 1
    %13 = vsyncpa %s12, 0
    %14 = vsyncpa [#allocation7], 0
    %s15 = scalar_lea.sflag [#allocation7], 1
    %16 = vsyncpa %s15, 0
    loop: start=0, step=1, limit=4
    $region2: #{attention_forward.4} parent=1 // loop_pre_header
      _
    $region3: #{attention_forward.4} parent=1 // loop_header
      %s18 = sphi 0, %s22
      %p19 = scmp.ge.s32.totalorder %s18, 4
      %s25 = sphi 0, %s44
      %s26 = sphi 0, %s40
      %s27 = sphi 0, %s36
      %s28 = sphi 0, %s25
      %s29 = sphi 0, %s26
      %s30 = sphi 0, %s27
      %s31 = sphi 0, %s28
      %s32 = sphi 0, %s29
      %s33 = sphi 0, %s30
      %s49 = sphi 0, %s51
      %s52 = sphi 0, %s49
      %s53 = sphi 0, %s52
      %s69 = sphi 0, %s53
      %s77 = sphi 0, %s79
      %s80 = sphi 0, %s77
      %s81 = sphi 0, %s80
      %s97 = sphi 0, %s81
      %s105 = sphi 0, %s107
      %s108 = sphi 0, %s105
      %s109 = sphi 0, %s108
      %s125 = sphi 0, %s109
      %s133 = sphi 0, %s135
      %s136 = sphi 0, %s133
      %s137 = sphi 0, %s136
      %s153 = sphi 0, %s137
    $region4: #{attention_forward.4} parent=1 // loop_header_branch
      %21 = sbr.rel (%p19) target = $region8
    $region5: #{attention_forward.4} parent=1 // loop_body
      %s23 = ssub.s32 %s18, 1
      %s24 = ssub.s32 %s18, 2
      %s34 = sadd.s32 1, %s27
      %p35 = scmp.ge.s32.totalorder %s34, 1
      %s36 = scalar_select %p35, 0, %s34
      %s37 = sadd.s32 1, %s26
      %s38 = scalar_select %p35, %s37, %s26
      %p39 = scmp.ge.s32.totalorder %s38, 1
      %s40 = scalar_select %p39, 0, %s38
      %s41 = sadd.s32 1, %s25
      %s42 = scalar_select %p39, %s41, %s25
      %p43 = scmp.ge.s32.totalorder %s42, 2
      %s44 = scalar_select %p43, 0, %s42
      %s45 = ssub.s32 %s25, %s44
      %s46 = ssub.s32 %s26, %s40
      %s47 = sor.u32 %s45, %s46
      %p48 = scmp.eq.s32.totalorder %s47, 0
      %s50 = sadd.s32 %s49, 1
      %s51 = scalar_select %p48, %s49, %s50
      %p54 = pneg %p48
      %p55 = scmp.eq.s32.totalorder %s18, 1
      %p56 = por %p54, %p55
      %p57 = scmp.ne.s32.totalorder %s49, %s52
      %p58 = scmp.eq.s32.totalorder %s18, 0
      %p59 = por %p57, %p58
      %p60 = scmp.ne.s32.totalorder %s49, %s52
      %p61 = scmp.eq.s32.totalorder %s23, 1
      %p62 = por %p60, %p61
      %p63 = scmp.ne.s32.totalorder %s52, %s53
      %p64 = scmp.eq.s32.totalorder %s23, 0
      %p65 = por %p63, %p64
      %p66 = scmp.ne.s32.totalorder %s52, %s53
      %p67 = scmp.eq.s32.totalorder %s24, 1
      %p68 = por %p66, %p67
      %p70 = scmp.ne.s32.totalorder %s53, %s69
      %p71 = scmp.eq.s32.totalorder %s24, 0
      %p72 = por %p70, %p71
      %s73 = ssub.s32 %s25, %s44
      %s74 = ssub.s32 %s27, %s36
      %s75 = sor.u32 %s73, %s74
      %p76 = scmp.eq.s32.totalorder %s75, 0
      %s78 = sadd.s32 %s77, 1
      %s79 = scalar_select %p76, %s77, %s78
      %p82 = pneg %p76
      %p83 = scmp.eq.s32.totalorder %s18, 1
      %p84 = por %p82, %p83
      %p85 = scmp.ne.s32.totalorder %s77, %s80
      %p86 = scmp.eq.s32.totalorder %s18, 0
      %p87 = por %p85, %p86
      %p88 = scmp.ne.s32.totalorder %s77, %s80
      %p89 = scmp.eq.s32.totalorder %s23, 1
      %p90 = por %p88, %p89
      %p91 = scmp.ne.s32.totalorder %s80, %s81
      %p92 = scmp.eq.s32.totalorder %s23, 0
      %p93 = por %p91, %p92
      %p94 = scmp.ne.s32.totalorder %s80, %s81
      %p95 = scmp.eq.s32.totalorder %s24, 1
      %p96 = por %p94, %p95
      %p98 = scmp.ne.s32.totalorder %s81, %s97
      %p99 = scmp.eq.s32.totalorder %s24, 0
      %p100 = por %p98, %p99
      %s101 = ssub.s32 %s25, %s44
      %s102 = ssub.s32 %s27, %s36
      %s103 = sor.u32 %s101, %s102
      %p104 = scmp.eq.s32.totalorder %s103, 0
      %s106 = sadd.s32 %s105, 1
      %s107 = scalar_select %p104, %s105, %s106
      %p110 = pneg %p104
      %p111 = scmp.eq.s32.totalorder %s18, 1
      %p112 = por %p110, %p111
      %p113 = scmp.ne.s32.totalorder %s105, %s108
      %p114 = scmp.eq.s32.totalorder %s18, 0
      %p115 = por %p113, %p114
      %p116 = scmp.ne.s32.totalorder %s105, %s108
      %p117 = scmp.eq.s32.totalorder %s23, 1
      %p118 = por %p116, %p117
      %p119 = scmp.ne.s32.totalorder %s108, %s109
      %p120 = scmp.eq.s32.totalorder %s23, 0
      %p121 = por %p119, %p120
      %p122 = scmp.ne.s32.totalorder %s108, %s109
      %p123 = scmp.eq.s32.totalorder %s24, 1
      %p124 = por %p122, %p123
      %p126 = scmp.ne.s32.totalorder %s109, %s125
      %p127 = scmp.eq.s32.totalorder %s24, 0
      %p128 = por %p126, %p127
      %s129 = ssub.s32 %s25, %s44
      %s130 = ssub.s32 %s26, %s40
      %s131 = sor.u32 %s129, %s130
      %p132 = scmp.eq.s32.totalorder %s131, 0
      %s134 = sadd.s32 %s133, 1
      %s135 = scalar_select %p132, %s133, %s134
      %p138 = pneg %p132
      %p139 = scmp.eq.s32.totalorder %s18, 1
      %p140 = por %p138, %p139
      %p141 = scmp.ne.s32.totalorder %s133, %s136
      %p142 = scmp.eq.s32.totalorder %s18, 0
      %p143 = por %p141, %p142
      %p144 = scmp.ne.s32.totalorder %s133, %s136
      %p145 = scmp.eq.s32.totalorder %s23, 1
      %p146 = por %p144, %p145
      %p147 = scmp.ne.s32.totalorder %s136, %s137
      %p148 = scmp.eq.s32.totalorder %s23, 0
      %p149 = por %p147, %p148
      %p150 = scmp.ne.s32.totalorder %s136, %s137
      %p151 = scmp.eq.s32.totalorder %s24, 1
      %p152 = por %p150, %p151
      %p154 = scmp.ne.s32.totalorder %s137, %s153
      %p155 = scmp.eq.s32.totalorder %s24, 0
      %p156 = por %p154, %p155
      %p157 = scmp.le.s32.totalorder 1, %s18
      %p158 = scmp.lt.s32.totalorder %s18, 3
      %p159 = pnand %p157, %p158
      %p160 = pneg %p159
      // Predicated region
      $region9: #{attention_forward.4} parent=5 // pred_check
        _
      $region10: #{attention_forward.4} parent=5 // pred_check_branch
        %162 = sbr.rel (%p159) target = $region12
      $region11: #{attention_forward.4} parent=5 // pred_region
        %s163 = ssub.s32 %s18, 1
      $region12: #{attention_forward.4} parent=5 // pred_fallthru
        _
      %p164 = scmp.lt.s32.totalorder %s18, 2
      // Predicated region
      $region13: #{attention_forward.4} parent=5 // pred_check
        %p165 = pneg %p164
      $region14: #{attention_forward.4} parent=5 // pred_check_branch
        %167 = sbr.rel (%p165) target = $region16
      $region15: #{attention_forward.4} parent=5 // pred_region
        // Predicated region
        $region17: #{attention_forward.4} parent=15 // pred_check
          %p168 = pneg %p59
        $region18: #{attention_forward.4} parent=15 // pred_check_branch
          %170 = sbr.rel (%p168) target = $region20
        $region19: #{attention_forward.4} parent=15 // pred_region
          %s171 = sand.u32 %s49, 1
          %s172 = scalar_lea.sflag [#allocation6], %s171
          %s173 = sand.u32 %s49, 1
          %s174 = smul.addr %s173, 4
          %s175 = scalar_lea.vmem [#allocation5], %s174
          %s177 = ssub.s32 64, 64
          %178 = vsyncadd %s172, %s177
          %s179 = sadd.s32 %s26, %s25
          %s180 = smul.addr %s179, 64
          %s181 = scalar_lea.hbm %s0, %s180
          %s183 = sshll.u32 %s175, 4
          %s184 = int_to_ptr.vmem [resolvable:$true] %s183
          %186 = dma.hbm_to_vmem [thread:$0]  %s181, 64, %s184, %s172
        $region20: #{attention_forward.4} parent=15 // pred_fallthru
          _
        // Predicated region
        $region21: #{attention_forward.4} parent=15 // pred_check
          %p187 = pneg %p87
        $region22: #{attention_forward.4} parent=15 // pred_check_branch
          %189 = sbr.rel (%p187) target = $region24
        $region23: #{attention_forward.4} parent=15 // pred_region
          %s190 = sand.u32 %s18, 1
          %s191 = scalar_lea.sflag [#allocation9], %s190
          %s192 = sand.u32 %s77, 1
          %s193 = smul.addr %s192, 4
          %s194 = scalar_lea.vmem [#allocation8], %s193
          %s196 = ssub.s32 64, 64
          %197 = vsyncadd %s191, %s196
          %s198 = sadd.s32 %s27, %s25
          %s199 = smul.addr %s198, 64
          %s200 = scalar_lea.hbm %s1, %s199
          %s202 = sshll.u32 %s194, 4
          %s203 = int_to_ptr.vmem [resolvable:$true] %s202
          %205 = dma.hbm_to_vmem [thread:$0]  %s200, 64, %s203, %s191
        $region24: #{attention_forward.4} parent=15 // pred_fallthru
          _
        // Predicated region
        $region25: #{attention_forward.4} parent=15 // pred_check
          %p206 = pneg %p115
        $region26: #{attention_forward.4} parent=15 // pred_check_branch
          %208 = sbr.rel (%p206) target = $region28
        $region27: #{attention_forward.4} parent=15 // pred_region
          %s209 = sand.u32 %s18, 1
          %s210 = scalar_lea.sflag [#allocation9], %s209
          %s211 = sand.u32 %s105, 1
          %s212 = smul.addr %s211, 4
          %s213 = scalar_lea.vmem [#allocation10], %s212
          %s215 = ssub.s32 64, 64
          %216 = vsyncadd %s210, %s215
          %s217 = sadd.s32 %s27, %s25
          %s218 = smul.addr %s217, 64
          %s219 = scalar_lea.hbm %s2, %s218
          %s221 = sshll.u32 %s213, 4
          %s222 = int_to_ptr.vmem [resolvable:$true] %s221
          %224 = dma.hbm_to_vmem [thread:$0]  %s219, 64, %s222, %s210
        $region28: #{attention_forward.4} parent=15 // pred_fallthru
          _
      $region16: #{attention_forward.4} parent=5 // pred_fallthru
        _
      %p225 = scmp.le.s32.totalorder 1, %s18
      %p226 = scmp.lt.s32.totalorder %s18, 3
      %p227 = pnand %p225, %p226
      %p228 = pneg %p227
      // Predicated region
      $region29: #{attention_forward.4} parent=5 // pred_check
        _
      $region30: #{attention_forward.4} parent=5 // pred_check_branch
        %230 = sbr.rel (%p227) target = $region32
      $region31: #{attention_forward.4} parent=5 // pred_region
        %s231 = ssub.s32 %s18, 1
        %s232 = sand.u32 %s52, 1
        %s233 = scalar_lea.sflag [#allocation6], %s232
        %s234 = sand.u32 %s52, 1
        %s235 = smul.addr %s234, 4
        %s236 = scalar_lea.vmem [#allocation5], %s235
        // Predicated region
        $region33: #{attention_forward.4} parent=31 // pred_check
          %p237 = pneg %p65
        $region34: #{attention_forward.4} parent=31 // pred_check_branch
          %239 = sbr.rel (%p237) target = $region36
        $region35: #{attention_forward.4} parent=31 // pred_region
          %240 = dma.done %s233, 64
        $region36: #{attention_forward.4} parent=31 // pred_fallthru
          _
        %s241 = sand.u32 %s23, 1
        %s242 = scalar_lea.sflag [#allocation9], %s241
        %s243 = sand.u32 %s80, 1
        %s244 = smul.addr %s243, 4
        %s245 = scalar_lea.vmem [#allocation8], %s244
        // Predicated region
        $region37: #{attention_forward.4} parent=31 // pred_check
          %p246 = pneg %p93
        $region38: #{attention_forward.4} parent=31 // pred_check_branch
          %248 = sbr.rel (%p246) target = $region40
        $region39: #{attention_forward.4} parent=31 // pred_region
          %249 = dma.done %s242, 64
        $region40: #{attention_forward.4} parent=31 // pred_fallthru
          _
        %s250 = sand.u32 %s23, 1
        %s251 = scalar_lea.sflag [#allocation9], %s250
        %s252 = sand.u32 %s108, 1
        %s253 = smul.addr %s252, 4
        %s254 = scalar_lea.vmem [#allocation10], %s253
        // Predicated region
        $region41: #{attention_forward.4} parent=31 // pred_check
          %p255 = pneg %p121
        $region42: #{attention_forward.4} parent=31 // pred_check_branch
          %257 = sbr.rel (%p255) target = $region44
        $region43: #{attention_forward.4} parent=31 // pred_region
          %258 = dma.done %s251, 64
        $region44: #{attention_forward.4} parent=31 // pred_fallthru
          _
        %s259 = sand.u32 %s52, 1
        %s260 = scalar_lea.sflag [#allocation6], %s259
        %s261 = sand.u32 %s52, 1
        %s262 = smul.addr %s261, 4
        %s263 = scalar_lea.vmem [#allocation5], %s262
        %p264 = pneg %p65
        %p265 = pneg %p62
        %s266 = sand.u32 %s23, 1
        %s267 = scalar_lea.sflag [#allocation9], %s266
        %s268 = sand.u32 %s80, 1
        %s269 = smul.addr %s268, 4
        %s270 = scalar_lea.vmem [#allocation8], %s269
        %p271 = pneg %p93
        %p272 = pneg %p90
        %s273 = sand.u32 %s23, 1
        %s274 = scalar_lea.sflag [#allocation9], %s273
        %s275 = sand.u32 %s108, 1
        %s276 = smul.addr %s275, 4
        %s277 = scalar_lea.vmem [#allocation10], %s276
        %p278 = pneg %p121
        %p279 = pneg %p118
        %p280 = pneg %p149
        %p281 = pneg %p146
        %s282 = sand.u32 %s136, 1
        %s283 = scalar_lea.sflag [#allocation7], %s282
        %s284 = sand.u32 %s136, 1
        %s285 = smul.addr %s284, 8
        %s286 = scalar_lea.vmem [#allocation11], %s285
        %p288 = scmp.eq.s32.totalorder %s30, 0
        // Predicated region
        $region45: #{attention_forward.4} parent=31 // pred_check
          %p289 = pneg %p288
        $region46: #{attention_forward.4} parent=31 // pred_check_branch
          %291 = sbr.rel (%p289) target = $region48
        $region47: #{attention_forward.4} parent=31 // pred_region
          %vm292 = vcmask 31744
          %293 = vst.msk [vmem:[#allocation2] sm:$0xff] %vm292, -inf
          %294 = vst.msk [vmem:[#allocation3] sm:$0xff] %vm292, 0.0
          %vm295 = vcmask 64512
          %296 = vst.msk [vmem:[#allocation4] sm:$0xff] %vm295, 0.0
          %297 = vst.msk [vmem:[#allocation4 + $0x8] sm:$0xff] %vm295, 0.0
          %298 = vst.msk [vmem:[#allocation4 + $0x10] sm:$0xff] %vm295, 0.0
          %299 = vst.msk [vmem:[#allocation4 + $0x18] sm:$0xff] %vm295, 0.0
        $region48: #{attention_forward.4} parent=31 // pred_fallthru
          _
        %s300 = smul.u32 %s29, 8
        %s301 = smul.u32 %s30, 8
        %s302 = sadd.s32 %s300, 7
        %p303 = scmp.le.s32.totalorder %s301, %s302
        // Predicated region
        $region49: #{attention_forward.4} parent=31 // pred_check
          %p304 = pneg %p303
        $region50: #{attention_forward.4} parent=31 // pred_check_branch
          %306 = sbr.rel (%p304) target = $region52
        $region51: #{attention_forward.4} parent=31 // pred_region
          %v307 = vlaneseq
          %v308 = vshrl.u32 %v307, 7
          %v309 = vstv %s300
          %v310 = vadd.s32 %v309, %v308
          %v311 = vlaneseq
          %v312 = vand.u32 %v311, 127
          %v313 = vstv %s301
          %v314 = vadd.s32 %v313, %v312
          %vm315 = vcmp.ge.s32.totalorder %v310, %v314
          %v316 = vld [vmem:[%s236] sm:$0xf]
          %v317 = vld [vmem:[%s245] sm:$0xf]
          %v318 = vld [vmem:[%s254] sm:$0xf]
          %vm319 = vcmask 64512
          %v321 = vsel %vm319, %v316, 0
          %v324 = vsel %vm319, %v317, 0
          %326 = vmatprep.subr.bf16.mxu0 0
          %327 = vmatpush1.bf16.xpose.msra.mxu0 %v324
          %328 = vmatprep.subr.bf16.mxu0 0
          %329 = vmatpush1.bf16.xpose.msra.mxu0 0
          %330 = vmatprep.subr.bf16.mxu0 0
          %331 = vmatpush1.bf16.xpose.msra.mxu0 0
          %332 = vmatprep.subr.bf16.mxu0 0
          %333 = vmatpush1.bf16.xpose.msra.mxu0 0
          %334 = vmatprep.subr.bf16.mxu0 0
          %335 = vmatpush1.bf16.xpose.msra.mxu0 0
          %336 = vmatprep.subr.bf16.mxu0 0
          %337 = vmatpush1.bf16.xpose.msra.mxu0 0
          %338 = vmatprep.subr.bf16.mxu0 0
          %339 = vmatpush1.bf16.xpose.msra.mxu0 0
          %340 = vmatprep.subr.bf16.mxu0 0
          %341 = vmatpush1.bf16.xpose.msra.mxu0 0
          %342 = vmatprep.subr.bf16.mxu0 0
          %343 = vmatpush1.bf16.xpose.msra.mxu0 0
          %344 = vmatprep.subr.bf16.mxu0 0
          %345 = vmatpush1.bf16.xpose.msra.mxu0 0
          %346 = vmatprep.subr.bf16.mxu0 0
          %347 = vmatpush1.bf16.xpose.msra.mxu0 0
          %348 = vmatprep.subr.bf16.mxu0 0
          %349 = vmatpush1.bf16.xpose.msra.mxu0 0
          %350 = vmatprep.subr.bf16.mxu0 0
          %351 = vmatpush1.bf16.xpose.msra.mxu0 0
          %352 = vmatprep.subr.bf16.mxu0 0
          %353 = vmatpush1.bf16.xpose.msra.mxu0 0
          %354 = vmatprep.subr.bf16.mxu0 0
          %355 = vmatpush1.bf16.xpose.msra.mxu0 0
          %356 = vmatprep.subr.bf16.mxu0 0
          %357 = vmatpush1.bf16.xpose.msra.mxu0 0
          %358 = vmatprep.mubr.bf16.mxu0 0
          %359 = vmatmul.mubr.bf16.gmra.mrb[0].mxu0 %v321
          %v360 = vpop.f32.mrb[0].mxu0
          %v361 = vadd.f32 0.0, %v360
          %v362 = vpop.f32.mrb[0].mxu0
          %v363 = vpop.f32.mrb[0].mxu0
          %v364 = vpop.f32.mrb[0].mxu0
          %365 = vdwg.mxu0
          %v366 = vsel %vm315, %v361, -1e+30
          %v367 = vld [vmem:[#allocation2] sm:$0xff]
          %v368 = vsel %vm319, %v366, -inf
          %369 = vmax.xlane.f32.xlu0 %v368
          %v370 = vpop.xlane.xlu0 %369
          %v371 = vmax.f32 %v367, %v370
          %v372 = vsub.f32 %v367, %v371
          %v373 = vmul.f32 %v372, 1.442695
          %v374 = vpow.pop %v373
          %376 = vset.pattern.permute.xlu0 0
          %377 = vperm.xlu0 %376, %v371
          %v378 = vpop.permute.xlu0 %377
          %v380 = vsub.f32 %v366, %v378
          %v381 = vmul.f32 %v380, 1.442695
          %v382 = vpow.pop %v381
          %v383 = vld [vmem:[#allocation3] sm:$0xff]
          %v384 = vmul.f32 %v374, %v383
          %v385 = vsel %vm319, %v382, 0.0
          %386 = vadd.xlane.f32.xlu0 %v385
          %v387 = vpop.xlane.xlu0 %386
          %v388 = vadd.f32 %v384, %v387
          %vm389 = vcmask 7168
          %390 = vst.msk [vmem:[#allocation3] sm:$0xff] %vm389, %v388
          %v391 = vld [vmem:[#allocation4] sm:$0xff]
          %393 = vset.pattern.permute.xlu0 0
          %394 = vperm.xlu0 %393, %v374
          %v395 = vpop.permute.xlu0 %394
          %v397 = vmul.f32 %v395, %v391
          %v398 = vpack.c.bf16 %v382, %v382
          %v400 = vsel %vm319, %v398, 0
          %vm402 = vcmask 1043456
          %v404 = vsel %vm402, %v318, 0
          %406 = vmatprep.subr.bf16.mxu0 0
          %407 = vmatpush1.bf16.msra.mxu0 %v404
          %408 = vmatprep.subr.bf16.mxu0 0
          %409 = vmatpush1.bf16.msra.mxu0 0
          %410 = vmatprep.subr.bf16.mxu0 0
          %411 = vmatpush1.bf16.msra.mxu0 0
          %412 = vmatprep.subr.bf16.mxu0 0
          %413 = vmatpush1.bf16.msra.mxu0 0
          %414 = vmatprep.subr.bf16.mxu0 0
          %415 = vmatpush1.bf16.msra.mxu0 0
          %416 = vmatprep.subr.bf16.mxu0 0
          %417 = vmatpush1.bf16.msra.mxu0 0
          %418 = vmatprep.subr.bf16.mxu0 0
          %419 = vmatpush1.bf16.msra.mxu0 0
          %420 = vmatprep.subr.bf16.mxu0 0
          %421 = vmatpush1.bf16.msra.mxu0 0
          %422 = vmatprep.subr.bf16.mxu0 0
          %423 = vmatpush1.bf16.msra.mxu0 0
          %424 = vmatprep.subr.bf16.mxu0 0
          %425 = vmatpush1.bf16.msra.mxu0 0
          %426 = vmatprep.subr.bf16.mxu0 0
          %427 = vmatpush1.bf16.msra.mxu0 0
          %428 = vmatprep.subr.bf16.mxu0 0
          %429 = vmatpush1.bf16.msra.mxu0 0
          %430 = vmatprep.subr.bf16.mxu0 0
          %431 = vmatpush1.bf16.msra.mxu0 0
          %432 = vmatprep.subr.bf16.mxu0 0
          %433 = vmatpush1.bf16.msra.mxu0 0
          %434 = vmatprep.subr.bf16.mxu0 0
          %435 = vmatpush1.bf16.msra.mxu0 0
          %436 = vmatprep.subr.bf16.mxu0 0
          %437 = vmatpush1.bf16.msra.mxu0 0
          %438 = vmatprep.mubr.bf16.mxu0 0
          %439 = vmatmul.mubr.bf16.gmra.mrb[0].mxu0 %v400
          %v440 = vpop.f32.mrb[0].mxu0
          %v441 = vadd.f32 0.0, %v440
          %v442 = vpop.f32.mrb[0].mxu0
          %v443 = vpop.f32.mrb[0].mxu0
          %v444 = vpop.f32.mrb[0].mxu0
          %445 = vdwg.mxu0
          %v446 = vadd.f32 %v397, %v441
          %447 = vst.msk [vmem:[#allocation4] sm:$0xff] %vm319, %v446
          %448 = vst.msk [vmem:[#allocation2] sm:$0xff] %vm389, %v371
          %v449 = vld [vmem:[%s236] sm:$0xf]
          %v450 = vld [vmem:[%s245] sm:$0xf]
          %v451 = vld [vmem:[%s254] sm:$0xf]
          %v453 = vunpack.c.l.b16 %v449
          %v454 = vpack.c.b16 %v453, %v453
          %455 = vrot.lane.b32.xlu0 %v454, 120
          %v456 = vpop.permute.xlu0 %455
          %v458 = vsel %vm319, %v456, 0
          %v461 = vsel %vm319, %v450, 0
          %463 = vmatprep.subr.bf16.mxu0 0
          %464 = vmatpush1.bf16.xpose.msra.mxu0 %v461
          %465 = vmatprep.subr.bf16.mxu0 0
          %466 = vmatpush1.bf16.xpose.msra.mxu0 0
          %467 = vmatprep.subr.bf16.mxu0 0
          %468 = vmatpush1.bf16.xpose.msra.mxu0 0
          %469 = vmatprep.subr.bf16.mxu0 0
          %470 = vmatpush1.bf16.xpose.msra.mxu0 0
          %471 = vmatprep.subr.bf16.mxu0 0
          %472 = vmatpush1.bf16.xpose.msra.mxu0 0
          %473 = vmatprep.subr.bf16.mxu0 0
          %474 = vmatpush1.bf16.xpose.msra.mxu0 0
          %475 = vmatprep.subr.bf16.mxu0 0
          %476 = vmatpush1.bf16.xpose.msra.mxu0 0
          %477 = vmatprep.subr.bf16.mxu0 0
          %478 = vmatpush1.bf16.xpose.msra.mxu0 0
          %479 = vmatprep.subr.bf16.mxu0 0
          %480 = vmatpush1.bf16.xpose.msra.mxu0 0
          %481 = vmatprep.subr.bf16.mxu0 0
          %482 = vmatpush1.bf16.xpose.msra.mxu0 0
          %483 = vmatprep.subr.bf16.mxu0 0
          %484 = vmatpush1.bf16.xpose.msra.mxu0 0
          %485 = vmatprep.subr.bf16.mxu0 0
          %486 = vmatpush1.bf16.xpose.msra.mxu0 0
          %487 = vmatprep.subr.bf16.mxu0 0
          %488 = vmatpush1.bf16.xpose.msra.mxu0 0
          %489 = vmatprep.subr.bf16.mxu0 0
          %490 = vmatpush1.bf16.xpose.msra.mxu0 0
          %491 = vmatprep.subr.bf16.mxu0 0
          %492 = vmatpush1.bf16.xpose.msra.mxu0 0
          %493 = vmatprep.subr.bf16.mxu0 0
          %494 = vmatpush1.bf16.xpose.msra.mxu0 0
          %495 = vmatprep.mubr.bf16.mxu0 0
          %496 = vmatmul.mubr.bf16.gmra.mrb[0].mxu0 %v458
          %v497 = vpop.f32.mrb[0].mxu0
          %v498 = vadd.f32 0.0, %v497
          %v499 = vpop.f32.mrb[0].mxu0
          %v500 = vpop.f32.mrb[0].mxu0
          %v501 = vpop.f32.mrb[0].mxu0
          %502 = vdwg.mxu0
          %v503 = vsel %vm315, %v498, -1e+30
          %v504 = vld [vmem:[#allocation2] sm:$0xff]
          %v505 = vsel %vm319, %v503, -inf
          %506 = vmax.xlane.f32.xlu0 %v505
          %v507 = vpop.xlane.xlu0 %506
          %v508 = vmax.f32 %v504, %v507
          %v509 = vsub.f32 %v504, %v508
          %v510 = vmul.f32 %v509, 1.442695
          %v511 = vpow.pop %v510
          %513 = vset.pattern.permute.xlu0 1
          %514 = vperm.xlu0 %513, %v508
          %v515 = vpop.permute.xlu0 %514
          %v517 = vsub.f32 %v503, %v515
          %v518 = vmul.f32 %v517, 1.442695
          %v519 = vpow.pop %v518
          %v520 = vld [vmem:[#allocation3] sm:$0xff]
          %v521 = vmul.f32 %v511, %v520
          %v522 = vsel %vm319, %v519, 0.0
          %523 = vadd.xlane.f32.xlu0 %v522
          %v524 = vpop.xlane.xlu0 %523
          %v525 = vadd.f32 %v521, %v524
          %vm526 = vcmask 15368
          %527 = vst.msk [vmem:[#allocation3] sm:$0xff] %vm526, %v525
          %s528 = scalar_lea.vmem [#allocation4], 8
          %v529 = vld [vmem:[%s528] sm:$0xff]
          %531 = vset.pattern.permute.xlu0 1
          %532 = vperm.xlu0 %531, %v511
          %v533 = vpop.permute.xlu0 %532
          %v535 = vmul.f32 %v533, %v529
          %v536 = vpack.c.bf16 %v519, %v519
          %v538 = vsel %vm319, %v536, 0
          %v541 = vsel %vm402, %v451, 0
          %543 = vmatprep.subr.bf16.mxu0 0
          %544 = vmatpush1.bf16.msra.mxu0 %v541
          %545 = vmatprep.subr.bf16.mxu0 0
          %546 = vmatpush1.bf16.msra.mxu0 0
          %547 = vmatprep.subr.bf16.mxu0 0
          %548 = vmatpush1.bf16.msra.mxu0 0
          %549 = vmatprep.subr.bf16.mxu0 0
          %550 = vmatpush1.bf16.msra.mxu0 0
          %551 = vmatprep.subr.bf16.mxu0 0
          %552 = vmatpush1.bf16.msra.mxu0 0
          %553 = vmatprep.subr.bf16.mxu0 0
          %554 = vmatpush1.bf16.msra.mxu0 0
          %555 = vmatprep.subr.bf16.mxu0 0
          %556 = vmatpush1.bf16.msra.mxu0 0
          %557 = vmatprep.subr.bf16.mxu0 0
          %558 = vmatpush1.bf16.msra.mxu0 0
          %559 = vmatprep.subr.bf16.mxu0 0
          %560 = vmatpush1.bf16.msra.mxu0 0
          %561 = vmatprep.subr.bf16.mxu0 0
          %562 = vmatpush1.bf16.msra.mxu0 0
          %563 = vmatprep.subr.bf16.mxu0 0
          %564 = vmatpush1.bf16.msra.mxu0 0
          %565 = vmatprep.subr.bf16.mxu0 0
          %566 = vmatpush1.bf16.msra.mxu0 0
          %567 = vmatprep.subr.bf16.mxu0 0
          %568 = vmatpush1.bf16.msra.mxu0 0
          %569 = vmatprep.subr.bf16.mxu0 0
          %570 = vmatpush1.bf16.msra.mxu0 0
          %571 = vmatprep.subr.bf16.mxu0 0
          %572 = vmatpush1.bf16.msra.mxu0 0
          %573 = vmatprep.subr.bf16.mxu0 0
          %574 = vmatpush1.bf16.msra.mxu0 0
          %575 = vmatprep.mubr.bf16.mxu0 0
          %576 = vmatmul.mubr.bf16.gmra.mrb[0].mxu0 %v538
          %v577 = vpop.f32.mrb[0].mxu0
          %v578 = vadd.f32 0.0, %v577
          %v579 = vpop.f32.mrb[0].mxu0
          %v580 = vpop.f32.mrb[0].mxu0
          %v581 = vpop.f32.mrb[0].mxu0
          %582 = vdwg.mxu0
          %v583 = vadd.f32 %v535, %v578
          %584 = vst.msk [vmem:[%s528] sm:$0xff] %vm319, %v583
          %585 = vst.msk [vmem:[#allocation2] sm:$0xff] %vm526, %v508
          %v586 = vld [vmem:[%s236] sm:$0xf]
          %v587 = vld [vmem:[%s245] sm:$0xf]
          %v588 = vld [vmem:[%s254] sm:$0xf]
          %v590 = vunpack.c.l.b16 %v586
          %v591 = vpack.c.b16 %v590, %v590
          %592 = vrot.lane.b32.xlu0 %v591, 112
          %v593 = vpop.permute.xlu0 %592
          %v595 = vunpack.c.l.b16 %v587
          %v596 = vpack.c.b16 %v595, %v595
          %597 = vrot.lane.b32.xlu0 %v596, 120
          %v598 = vpop.permute.xlu0 %597
          %v600 = vsel %vm319, %v593, 0
          %v603 = vsel %vm319, %v598, 0
          %605 = vmatprep.subr.bf16.mxu0 0
          %606 = vmatpush1.bf16.xpose.msra.mxu0 %v603
          %607 = vmatprep.subr.bf16.mxu0 0
          %608 = vmatpush1.bf16.xpose.msra.mxu0 0
          %609 = vmatprep.subr.bf16.mxu0 0
          %610 = vmatpush1.bf16.xpose.msra.mxu0 0
          %611 = vmatprep.subr.bf16.mxu0 0
          %612 = vmatpush1.bf16.xpose.msra.mxu0 0
          %613 = vmatprep.subr.bf16.mxu0 0
          %614 = vmatpush1.bf16.xpose.msra.mxu0 0
          %615 = vmatprep.subr.bf16.mxu0 0
          %616 = vmatpush1.bf16.xpose.msra.mxu0 0
          %617 = vmatprep.subr.bf16.mxu0 0
          %618 = vmatpush1.bf16.xpose.msra.mxu0 0
          %619 = vmatprep.subr.bf16.mxu0 0
          %620 = vmatpush1.bf16.xpose.msra.mxu0 0
          %621 = vmatprep.subr.bf16.mxu0 0
          %622 = vmatpush1.bf16.xpose.msra.mxu0 0
          %623 = vmatprep.subr.bf16.mxu0 0
          %624 = vmatpush1.bf16.xpose.msra.mxu0 0
          %625 = vmatprep.subr.bf16.mxu0 0
          %626 = vmatpush1.bf16.xpose.msra.mxu0 0
          %627 = vmatprep.subr.bf16.mxu0 0
          %628 = vmatpush1.bf16.xpose.msra.mxu0 0
          %629 = vmatprep.subr.bf16.mxu0 0
          %630 = vmatpush1.bf16.xpose.msra.mxu0 0
          %631 = vmatprep.subr.bf16.mxu0 0
          %632 = vmatpush1.bf16.xpose.msra.mxu0 0
          %633 = vmatprep.subr.bf16.mxu0 0
          %634 = vmatpush1.bf16.xpose.msra.mxu0 0
          %635 = vmatprep.subr.bf16.mxu0 0
          %636 = vmatpush1.bf16.xpose.msra.mxu0 0
          %637 = vmatprep.mubr.bf16.mxu0 0
          %638 = vmatmul.mubr.bf16.gmra.mrb[0].mxu0 %v600
          %v639 = vpop.f32.mrb[0].mxu0
          %v640 = vadd.f32 0.0, %v639
          %v641 = vpop.f32.mrb[0].mxu0
          %v642 = vpop.f32.mrb[0].mxu0
          %v643 = vpop.f32.mrb[0].mxu0
          %644 = vdwg.mxu0
          %v645 = vsel %vm315, %v640, -1e+30
          %v646 = vld [vmem:[#allocation2] sm:$0xff]
          %v647 = vsel %vm319, %v645, -inf
          %648 = vmax.xlane.f32.xlu0 %v647
          %v649 = vpop.xlane.xlu0 %648
          %v650 = vmax.f32 %v646, %v649
          %v651 = vsub.f32 %v646, %v650
          %v652 = vmul.f32 %v651, 1.442695
          %v653 = vpow.pop %v652
          %655 = vset.pattern.permute.xlu0 2
          %656 = vperm.xlu0 %655, %v650
          %v657 = vpop.permute.xlu0 %656
          %v659 = vsub.f32 %v645, %v657
          %v660 = vmul.f32 %v659, 1.442695
          %v661 = vpow.pop %v660
          %v662 = vld [vmem:[#allocation3] sm:$0xff]
          %v663 = vmul.f32 %v653, %v662
          %v664 = vsel %vm319, %v661, 0.0
          %665 = vadd.xlane.f32.xlu0 %v664
          %v666 = vpop.xlane.xlu0 %665
          %v667 = vadd.f32 %v663, %v666
          %vm668 = vcmask 23568
          %669 = vst.msk [vmem:[#allocation3] sm:$0xff] %vm668, %v667
          %s670 = scalar_lea.vmem [#allocation4], 16
          %v671 = vld [vmem:[%s670] sm:$0xff]
          %673 = vset.pattern.permute.xlu0 2
          %674 = vperm.xlu0 %673, %v653
          %v675 = vpop.permute.xlu0 %674
          %v677 = vmul.f32 %v675, %v671
          %v678 = vpack.c.bf16 %v661, %v661
          %v680 = vunpack.c.l.b16 %v588
          %v681 = vpack.c.b16 %v680, %v680
          %682 = vrot.lane.b32.xlu0 %v681, 120
          %v683 = vpop.permute.xlu0 %682
          %v685 = vsel %vm319, %v678, 0
          %v688 = vsel %vm402, %v683, 0
          %690 = vmatprep.subr.bf16.mxu0 0
          %691 = vmatpush1.bf16.msra.mxu0 %v688
          %692 = vmatprep.subr.bf16.mxu0 0
          %693 = vmatpush1.bf16.msra.mxu0 0
          %694 = vmatprep.subr.bf16.mxu0 0
          %695 = vmatpush1.bf16.msra.mxu0 0
          %696 = vmatprep.subr.bf16.mxu0 0
          %697 = vmatpush1.bf16.msra.mxu0 0
          %698 = vmatprep.subr.bf16.mxu0 0
          %699 = vmatpush1.bf16.msra.mxu0 0
          %700 = vmatprep.subr.bf16.mxu0 0
          %701 = vmatpush1.bf16.msra.mxu0 0
          %702 = vmatprep.subr.bf16.mxu0 0
          %703 = vmatpush1.bf16.msra.mxu0 0
          %704 = vmatprep.subr.bf16.mxu0 0
          %705 = vmatpush1.bf16.msra.mxu0 0
          %706 = vmatprep.subr.bf16.mxu0 0
          %707 = vmatpush1.bf16.msra.mxu0 0
          %708 = vmatprep.subr.bf16.mxu0 0
          %709 = vmatpush1.bf16.msra.mxu0 0
          %710 = vmatprep.subr.bf16.mxu0 0
          %711 = vmatpush1.bf16.msra.mxu0 0
          %712 = vmatprep.subr.bf16.mxu0 0
          %713 = vmatpush1.bf16.msra.mxu0 0
          %714 = vmatprep.subr.bf16.mxu0 0
          %715 = vmatpush1.bf16.msra.mxu0 0
          %716 = vmatprep.subr.bf16.mxu0 0
          %717 = vmatpush1.bf16.msra.mxu0 0
          %718 = vmatprep.subr.bf16.mxu0 0
          %719 = vmatpush1.bf16.msra.mxu0 0
          %720 = vmatprep.subr.bf16.mxu0 0
          %721 = vmatpush1.bf16.msra.mxu0 0
          %722 = vmatprep.mubr.bf16.mxu0 0
          %723 = vmatmul.mubr.bf16.gmra.mrb[0].mxu0 %v685
          %v724 = vpop.f32.mrb[0].mxu0
          %v725 = vadd.f32 0.0, %v724
          %v726 = vpop.f32.mrb[0].mxu0
          %v727 = vpop.f32.mrb[0].mxu0
          %v728 = vpop.f32.mrb[0].mxu0
          %729 = vdwg.mxu0
          %v730 = vadd.f32 %v677, %v725
          %731 = vst.msk [vmem:[%s670] sm:$0xff] %vm319, %v730
          %732 = vst.msk [vmem:[#allocation2] sm:$0xff] %vm668, %v650
          %v733 = vld [vmem:[%s236] sm:$0xf]
          %v734 = vld [vmem:[%s245] sm:$0xf]
          %v735 = vld [vmem:[%s254] sm:$0xf]
          %v737 = vunpack.c.l.b16 %v733
          %v738 = vpack.c.b16 %v737, %v737
          %739 = vrot.lane.b32.xlu0 %v738, 104
          %v740 = vpop.permute.xlu0 %739
          %v742 = vunpack.c.l.b16 %v734
          %v743 = vpack.c.b16 %v742, %v742
          %744 = vrot.lane.b32.xlu0 %v743, 120
          %v745 = vpop.permute.xlu0 %744
          %v747 = vsel %vm319, %v740, 0
          %v750 = vsel %vm319, %v745, 0
          %752 = vmatprep.subr.bf16.mxu0 0
          %753 = vmatpush1.bf16.xpose.msra.mxu0 %v750
          %754 = vmatprep.subr.bf16.mxu0 0
          %755 = vmatpush1.bf16.xpose.msra.mxu0 0
          %756 = vmatprep.subr.bf16.mxu0 0
          %757 = vmatpush1.bf16.xpose.msra.mxu0 0
          %758 = vmatprep.subr.bf16.mxu0 0
          %759 = vmatpush1.bf16.xpose.msra.mxu0 0
          %760 = vmatprep.subr.bf16.mxu0 0
          %761 = vmatpush1.bf16.xpose.msra.mxu0 0
          %762 = vmatprep.subr.bf16.mxu0 0
          %763 = vmatpush1.bf16.xpose.msra.mxu0 0
          %764 = vmatprep.subr.bf16.mxu0 0
          %765 = vmatpush1.bf16.xpose.msra.mxu0 0
          %766 = vmatprep.subr.bf16.mxu0 0
          %767 = vmatpush1.bf16.xpose.msra.mxu0 0
          %768 = vmatprep.subr.bf16.mxu0 0
          %769 = vmatpush1.bf16.xpose.msra.mxu0 0
          %770 = vmatprep.subr.bf16.mxu0 0
          %771 = vmatpush1.bf16.xpose.msra.mxu0 0
          %772 = vmatprep.subr.bf16.mxu0 0
          %773 = vmatpush1.bf16.xpose.msra.mxu0 0
          %774 = vmatprep.subr.bf16.mxu0 0
          %775 = vmatpush1.bf16.xpose.msra.mxu0 0
          %776 = vmatprep.subr.bf16.mxu0 0
          %777 = vmatpush1.bf16.xpose.msra.mxu0 0
          %778 = vmatprep.subr.bf16.mxu0 0
          %779 = vmatpush1.bf16.xpose.msra.mxu0 0
          %780 = vmatprep.subr.bf16.mxu0 0
          %781 = vmatpush1.bf16.xpose.msra.mxu0 0
          %782 = vmatprep.subr.bf16.mxu0 0
          %783 = vmatpush1.bf16.xpose.msra.mxu0 0
          %784 = vmatprep.mubr.bf16.mxu0 0
          %785 = vmatmul.mubr.bf16.gmra.mrb[0].mxu0 %v747
          %v786 = vpop.f32.mrb[0].mxu0
          %v787 = vadd.f32 0.0, %v786
          %v788 = vpop.f32.mrb[0].mxu0
          %v789 = vpop.f32.mrb[0].mxu0
          %v790 = vpop.f32.mrb[0].mxu0
          %791 = vdwg.mxu0
          %v792 = vsel %vm315, %v787, -1e+30
          %v793 = vld [vmem:[#allocation2] sm:$0xff]
          %v794 = vsel %vm319, %v792, -inf
          %795 = vmax.xlane.f32.xlu0 %v794
          %v796 = vpop.xlane.xlu0 %795
          %v797 = vmax.f32 %v793, %v796
          %v798 = vsub.f32 %v793, %v797
          %v799 = vmul.f32 %v798, 1.442695
          %v800 = vpow.pop %v799
          %802 = vset.pattern.permute.xlu0 3
          %803 = vperm.xlu0 %802, %v797
          %v804 = vpop.permute.xlu0 %803
          %v806 = vsub.f32 %v792, %v804
          %v807 = vmul.f32 %v806, 1.442695
          %v808 = vpow.pop %v807
          %v809 = vld [vmem:[#allocation3] sm:$0xff]
          %v810 = vmul.f32 %v800, %v809
          %v811 = vsel %vm319, %v808, 0.0
          %812 = vadd.xlane.f32.xlu0 %v811
          %v813 = vpop.xlane.xlu0 %812
          %v814 = vadd.f32 %v810, %v813
          %vm815 = vcmask 31768
          %816 = vst.msk [vmem:[#allocation3] sm:$0xff] %vm815, %v814
          %s817 = scalar_lea.vmem [#allocation4], 24
          %v818 = vld [vmem:[%s817] sm:$0xff]
          %820 = vset.pattern.permute.xlu0 3
          %821 = vperm.xlu0 %820, %v800
          %v822 = vpop.permute.xlu0 %821
          %v824 = vmul.f32 %v822, %v818
          %v825 = vpack.c.bf16 %v808, %v808
          %v827 = vunpack.c.l.b16 %v735
          %v828 = vpack.c.b16 %v827, %v827
          %829 = vrot.lane.b32.xlu0 %v828, 120
          %v830 = vpop.permute.xlu0 %829
          %v832 = vsel %vm319, %v825, 0
          %v835 = vsel %vm402, %v830, 0
          %837 = vmatprep.subr.bf16.mxu0 0
          %838 = vmatpush1.bf16.msra.mxu0 %v835
          %839 = vmatprep.subr.bf16.mxu0 0
          %840 = vmatpush1.bf16.msra.mxu0 0
          %841 = vmatprep.subr.bf16.mxu0 0
          %842 = vmatpush1.bf16.msra.mxu0 0
          %843 = vmatprep.subr.bf16.mxu0 0
          %844 = vmatpush1.bf16.msra.mxu0 0
          %845 = vmatprep.subr.bf16.mxu0 0
          %846 = vmatpush1.bf16.msra.mxu0 0
          %847 = vmatprep.subr.bf16.mxu0 0
          %848 = vmatpush1.bf16.msra.mxu0 0
          %849 = vmatprep.subr.bf16.mxu0 0
          %850 = vmatpush1.bf16.msra.mxu0 0
          %851 = vmatprep.subr.bf16.mxu0 0
          %852 = vmatpush1.bf16.msra.mxu0 0
          %853 = vmatprep.subr.bf16.mxu0 0
          %854 = vmatpush1.bf16.msra.mxu0 0
          %855 = vmatprep.subr.bf16.mxu0 0
          %856 = vmatpush1.bf16.msra.mxu0 0
          %857 = vmatprep.subr.bf16.mxu0 0
          %858 = vmatpush1.bf16.msra.mxu0 0
          %859 = vmatprep.subr.bf16.mxu0 0
          %860 = vmatpush1.bf16.msra.mxu0 0
          %861 = vmatprep.subr.bf16.mxu0 0
          %862 = vmatpush1.bf16.msra.mxu0 0
          %863 = vmatprep.subr.bf16.mxu0 0
          %864 = vmatpush1.bf16.msra.mxu0 0
          %865 = vmatprep.subr.bf16.mxu0 0
          %866 = vmatpush1.bf16.msra.mxu0 0
          %867 = vmatprep.subr.bf16.mxu0 0
          %868 = vmatpush1.bf16.msra.mxu0 0
          %869 = vmatprep.mubr.bf16.mxu0 0
          %870 = vmatmul.mubr.bf16.gmra.mrb[0].mxu0 %v832
          %v871 = vpop.f32.mrb[0].mxu0
          %v872 = vadd.f32 0.0, %v871
          %v873 = vpop.f32.mrb[0].mxu0
          %v874 = vpop.f32.mrb[0].mxu0
          %v875 = vpop.f32.mrb[0].mxu0
          %876 = vdwg.mxu0
          %v877 = vadd.f32 %v824, %v872
          %878 = vst.msk [vmem:[%s817] sm:$0xff] %vm319, %v877
          %879 = vst.msk [vmem:[#allocation2] sm:$0xff] %vm815, %v797
        $region52: #{attention_forward.4} parent=31 // pred_fallthru
          _
        // Predicated region
        $region53: #{attention_forward.4} parent=31 // pred_check
          %p880 = pneg %p288
        $region54: #{attention_forward.4} parent=31 // pred_check_branch
          %882 = sbr.rel (%p880) target = $region56
        $region55: #{attention_forward.4} parent=31 // pred_region
          %v883 = vld [vmem:[#allocation4] sm:$0xff]
          %v884 = vld [vmem:[#allocation3] sm:$0xff]
          %886 = vset.pattern.permute.xlu0 0
          %887 = vperm.xlu0 %886, %v884
          %v888 = vpop.permute.xlu0 %887
          %v890 = vrcp.pop %v888
          %v891 = vmul.f32 %v883, %v890
          %s892 = scalar_lea.vmem [#allocation4], 8
          %v893 = vld [vmem:[%s892] sm:$0xff]
          %894 = vset.pattern.permute.xlu0 1
          %895 = vperm.xlu0 %894, %v884
          %v896 = vpop.permute.xlu0 %895
          %v898 = vrcp.pop %v896
          %v899 = vmul.f32 %v893, %v898
          %s900 = scalar_lea.vmem [#allocation4], 16
          %v901 = vld [vmem:[%s900] sm:$0xff]
          %902 = vset.pattern.permute.xlu0 2
          %903 = vperm.xlu0 %902, %v884
          %v904 = vpop.permute.xlu0 %903
          %v906 = vrcp.pop %v904
          %v907 = vmul.f32 %v901, %v906
          %s908 = scalar_lea.vmem [#allocation4], 24
          %v909 = vld [vmem:[%s908] sm:$0xff]
          %910 = vset.pattern.permute.xlu0 3
          %911 = vperm.xlu0 %910, %v884
          %v912 = vpop.permute.xlu0 %911
          %v914 = vrcp.pop %v912
          %v915 = vmul.f32 %v909, %v914
          %917 = vrot.lane.b32.xlu0 %v899, 8
          %v918 = vpop.permute.xlu0 %917
          %921 = vrot.lane.b32.xlu0 %v907, 16
          %v922 = vpop.permute.xlu0 %921
          %925 = vrot.lane.b32.xlu0 %v915, 24
          %v926 = vpop.permute.xlu0 %925
          %vm928 = vcmask 64512
          %v929 = vsel %vm928, %v891, %v918
          %vm930 = vcmask 130048
          %v931 = vsel %vm930, %v929, %v922
          %vm932 = vcmask 195584
          %v933 = vsel %vm932, %v931, %v926
          %vm934 = vcmask 261120
          %935 = vst.msk [vmem:[%s286] sm:$0xff] %vm934, %v933
        $region56: #{attention_forward.4} parent=31 // pred_fallthru
          _
        %s936 = sand.u32 %s136, 1
        %s937 = scalar_lea.sflag [#allocation7], %s936
        %s938 = sand.u32 %s136, 1
        %s939 = smul.addr %s938, 8
        %s940 = scalar_lea.vmem [#allocation11], %s939
        // Predicated region
        $region57: #{attention_forward.4} parent=31 // pred_check
          %p941 = pneg %p146
        $region58: #{attention_forward.4} parent=31 // pred_check_branch
          %943 = sbr.rel (%p941) target = $region60
        $region59: #{attention_forward.4} parent=31 // pred_region
          %s945 = ssub.s32 128, 128
          %946 = vsyncadd %s937, %s945
          %s947 = sadd.s32 %s29, %s28
          %s948 = smul.addr %s947, 128
          %s949 = scalar_lea.hbm %s3, %s948
          %s951 = sshll.u32 %s940, 4
          %s952 = int_to_ptr.vmem [resolvable:$true] %s951
          %954 = dma.vmem_to_hbm [thread:$0]  %s952, 128, %s949, %s937
        $region60: #{attention_forward.4} parent=31 // pred_fallthru
          _
      $region32: #{attention_forward.4} parent=5 // pred_fallthru
        _
      %p955 = scmp.le.s32.totalorder 2, %s18
      // Predicated region
      $region61: #{attention_forward.4} parent=5 // pred_check
        %p956 = pneg %p955
      $region62: #{attention_forward.4} parent=5 // pred_check_branch
        %958 = sbr.rel (%p956) target = $region64
      $region63: #{attention_forward.4} parent=5 // pred_region
        %s959 = ssub.s32 %s18, 2
        // Predicated region
        $region65: #{attention_forward.4} parent=63 // pred_check
          %p960 = pneg %p152
        $region66: #{attention_forward.4} parent=63 // pred_check_branch
          %962 = sbr.rel (%p960) target = $region68
        $region67: #{attention_forward.4} parent=63 // pred_region
          %s963 = sand.u32 %s137, 1
          %s964 = scalar_lea.sflag [#allocation7], %s963
          %s965 = sand.u32 %s137, 1
          %s966 = smul.addr %s965, 8
          %s967 = scalar_lea.vmem [#allocation11], %s966
          %968 = dma.done %s964, 128
        $region68: #{attention_forward.4} parent=63 // pred_fallthru
          _
      $region64: #{attention_forward.4} parent=5 // pred_fallthru
        _
    $region6: #{attention_forward.4} parent=1 // loop_footer
      %s22 = sadd.s32 1, %s18
    $region7: #{attention_forward.4} parent=1 // loop_footer_branch
      %17 = sbr.rel target = $region3
    $region8: #{attention_forward.4} parent=1 // loop_exit
      _
    %969 = vsyncpa [#allocation6], 1
    %s970 = scalar_lea.sflag [#allocation6], 1
    %971 = vsyncpa %s970, 1
    %972 = vsyncpa [#allocation9], 1
    %s973 = scalar_lea.sflag [#allocation9], 1
    %974 = vsyncpa %s973, 1
    %975 = vsyncpa [#allocation7], 1
    %s976 = scalar_lea.sflag [#allocation7], 1
    %977 = vsyncpa %s976, 1

</llo_original>
